<compile_context>
chip_gen: v6e
topology: v6e:2x2x1
jax: 0.10.0
libtpu: 0.0.40
codegen_flags: <defaults>
</compile_context>

<pallas_src>
import jax
import jax.numpy as jnp
from jax.experimental import pallas as pl
from jax.experimental.pallas import tpu as pltpu


def down_kernel(x_ref, w1_ref, t1_ref, w2_ref, t2_ref, o_ref,
                pad1_ref, pad2_ref):
    # x_ref  : (1, Hp, 2, Wp, 2*Cin)  -- [n, h, h_sub, w, w_sub*Cin + c]
    # w*_ref : (9, C_in, C_out) bf16  -- tap-major (dy*3+dx), BN scale folded
    # t*_ref : (1, C_out) f32         -- BN shift (conv bias folded in)
    # o_ref  : (1, Hp, Wp, Cout)
    # pad*   : (Hp+2, Wp+2, C) f32    -- zero-halo conv input scratch
    Hp = x_ref.shape[1]
    Wp = x_ref.shape[3]
    cin = x_ref.shape[4] // 2
    cmid = w1_ref.shape[2]
    cout = w2_ref.shape[2]

    # ---------------- MaxPool2d(2) (VPU) ----------------
    top = x_ref[0, :, 0, :, :]                             # rows 2h   (Hp, Wp, 2*Cin)
    bot = x_ref[0, :, 1, :, :]                             # rows 2h+1
    hm = jnp.maximum(top, bot)
    pooled = jnp.maximum(hm[:, :, :cin], hm[:, :, cin:])   # (Hp, Wp, Cin)

    def conv3x3_shift_relu(pad_ref, interior, w_ref, t_ref, ci, co):
        # Zero only the 1-px halo (interior is fully overwritten each step;
        # order-independent, so safe with a "parallel" batch axis).
        pad_ref[pl.ds(0, 1), :, :] = jnp.zeros((1, Wp + 2, ci), pad_ref.dtype)
        pad_ref[pl.ds(Hp + 1, 1), :, :] = jnp.zeros((1, Wp + 2, ci), pad_ref.dtype)
        pad_ref[:, pl.ds(0, 1), :] = jnp.zeros((Hp + 2, 1, ci), pad_ref.dtype)
        pad_ref[:, pl.ds(Wp + 1, 1), :] = jnp.zeros((Hp + 2, 1, ci), pad_ref.dtype)
        pad_ref[pl.ds(1, Hp), pl.ds(1, Wp), :] = interior.astype(pad_ref.dtype)

        # 3x3 conv (pad=1) as 9 MXU matmuls, but only 3 shifted loads: one
        # column band per dx; the 3 dy taps of each band are contiguous row
        # windows of the flattened band (sublane-aligned when Wp % 8 == 0).
        acc = jnp.zeros((Hp * Wp, co), jnp.float32)
        for dx in range(3):
            band = pad_ref[:, pl.ds(dx, Wp), :]            # (Hp+2, Wp, ci)
            band = band.reshape((Hp + 2) * Wp, ci).astype(jnp.bfloat16)
            for dy in range(3):
                tap = band[dy * Wp: dy * Wp + Hp * Wp, :]  # (Hp*Wp, ci)
                acc = acc + jnp.dot(tap, w_ref[dy * 3 + dx, :, :],
                                    preferred_element_type=jnp.float32)
        # folded-BN shift + ReLU (scale is already inside the weights)
        return jnp.maximum(acc + t_ref[...], 0.0)          # (Hp*Wp, co) f32

    h1 = conv3x3_shift_relu(pad1_ref, pooled, w1_ref, t1_ref, cin, cmid)
    h2 = conv3x3_shift_relu(pad2_ref, h1.reshape(Hp, Wp, cmid),
                            w2_ref, t2_ref, cmid, cout)

    o_ref[...] = h2.reshape(1, Hp, Wp, cout).astype(o_ref.dtype)


def _fold_params(params, cin):
    """Fold BN scale / conv bias into bf16 tap-major weights + f32 shifts."""
    w1, s1, t1, w2, s2, t2 = params
    cmid = w1.shape[-1]
    cout = w2.shape[-1]
    w1q = (w1 * s1.reshape(1, 1, 1, cmid)).reshape(9, cin, cmid).astype(jnp.bfloat16)
    w2q = (w2 * s2.reshape(1, 1, 1, cout)).reshape(9, cmid, cout).astype(jnp.bfloat16)
    return (w1q, t1.reshape(1, cmid).astype(jnp.float32),
            w2q, t2.reshape(1, cout).astype(jnp.float32))


def down_forward(x_nchw, params):
    """Down.forward.  x_nchw: (N, Cin, H, W) -> (N, Cout, H//2, W//2)."""
    N, Cin, H, W = x_nchw.shape
    assert H % 2 == 0 and W % 2 == 0, "Down requires even spatial dims"
    Hp, Wp = H // 2, W // 2
    w1q, t1, w2q, t2 = _fold_params(params, Cin)
    Cmid = w1q.shape[-1]
    Cout = w2q.shape[-1]

    # NCHW -> NHWC (the only real relayout), then a *free* contiguous reshape
    # exposing the 2x2 pool window (no extra HBM shuffle):
    #   x5[n, h, hs, w, ws*Cin + c] == x_nhwc[n, 2h + hs, 2w + ws, c]
    x_nhwc = jnp.transpose(x_nchw, (0, 2, 3, 1))
    x5 = x_nhwc.reshape(N, Hp, 2, Wp, 2 * Cin)

    out_nhwc = pl.pallas_call(
        down_kernel,
        out_shape=jax.ShapeDtypeStruct((N, Hp, Wp, Cout), x_nchw.dtype),
        grid_spec=pltpu.PrefetchScalarGridSpec(
            num_scalar_prefetch=0,
            grid=(N,),
            in_specs=[
                pl.BlockSpec((1, Hp, 2, Wp, 2 * Cin), lambda n: (n, 0, 0, 0, 0)),
                pl.BlockSpec((9, Cin, Cmid), lambda n: (0, 0, 0)),
                pl.BlockSpec((1, Cmid), lambda n: (0, 0)),
                pl.BlockSpec((9, Cmid, Cout), lambda n: (0, 0, 0)),
                pl.BlockSpec((1, Cout), lambda n: (0, 0)),
            ],
            out_specs=pl.BlockSpec((1, Hp, Wp, Cout), lambda n: (n, 0, 0, 0)),
            scratch_shapes=[
                pltpu.VMEM((Hp + 2, Wp + 2, Cin), jnp.float32),   # padded pool
                pltpu.VMEM((Hp + 2, Wp + 2, Cmid), jnp.float32),  # padded mid
            ],
        ),
        compiler_params=pltpu.CompilerParams(
            dimension_semantics=("parallel",)),
    )(x5, w1q, t1, w2q, t2)

    return jnp.transpose(out_nhwc, (0, 3, 1, 2))   # back to NCHW


def init_params(key, cin, cout, dtype=jnp.float32):
    """Deterministic synthetic params for Conv2d + BatchNorm2d (x2), BN folded."""
    cmid = cout  # DoubleConv: mid_channels defaults to out_channels
    ks = jax.random.split(key, 4)

    def conv_init(k, ci, co):
        fan_in = ci * 9
        bound = 1.0 / (fan_in ** 0.5)
        kw, kb = jax.random.split(k)
        w = jax.random.uniform(kw, (3, 3, ci, co), dtype, -bound, bound)  # HWIO
        b = jax.random.uniform(kb, (co,), dtype, -bound, bound)
        return w, b

    def bn_init(k, c):
        k1, k2, k3, k4 = jax.random.split(k, 4)
        gamma = jax.random.uniform(k1, (c,), dtype, 0.5, 1.5)
        beta = 0.1 * jax.random.normal(k2, (c,), dtype)
        mean = 0.1 * jax.random.normal(k3, (c,), dtype)
        var = jax.random.uniform(k4, (c,), dtype, 0.5, 1.5)
        return gamma, beta, mean, var

    w1, b1 = conv_init(ks[0], cin, cmid)
    w2, b2 = conv_init(ks[1], cmid, cout)
    g1, be1, m1, v1 = bn_init(ks[2], cmid)
    g2, be2, m2, v2 = bn_init(ks[3], cout)

    eps = 1e-5
    s1 = g1 / jnp.sqrt(v1 + eps)
    t1 = be1 + (b1 - m1) * s1
    s2 = g2 / jnp.sqrt(v2 + eps)
    t2 = be2 + (b2 - m2) * s2
    return (w1, s1.reshape(1, cmid), t1.reshape(1, cmid),
            w2, s2.reshape(1, cout), t2.reshape(1, cout))


def down_reference(x_nchw, params):
    """Pure-JAX reference with the same numerics as the kernel
    (folded-BN bf16 weights, bf16 conv operands, f32 accumulation)."""
    N, Cin, H, W = x_nchw.shape
    w1q, t1, w2q, t2 = _fold_params(params, Cin)
    Cmid = w1q.shape[-1]
    Cout = w2q.shape[-1]
    w1f = w1q.astype(jnp.float32).reshape(3, 3, Cin, Cmid)
    w2f = w2q.astype(jnp.float32).reshape(3, 3, Cmid, Cout)

    x = jnp.transpose(x_nchw, (0, 2, 3, 1))
    pooled = x.reshape(N, H // 2, 2, W // 2, 2, Cin).max(axis=(2, 4))

    def conv_shift_relu(h, w, t):
        h = h.astype(jnp.bfloat16).astype(jnp.float32)  # match MXU bf16 operands
        dn = jax.lax.conv_dimension_numbers(h.shape, w.shape,
                                            ('NHWC', 'HWIO', 'NHWC'))
        y = jax.lax.conv_general_dilated(h, w, (1, 1), 'SAME',
                                         dimension_numbers=dn)
        return jnp.maximum(y + t.reshape(1, 1, 1, -1), 0.0)

    h = conv_shift_relu(pooled, w1f, t1)
    h = conv_shift_relu(h, w2f, t2)
    return jnp.transpose(h, (0, 3, 1, 2))


if __name__ == "__main__":
    key = jax.random.PRNGKey(0)
    kx, kp = jax.random.split(key)

    N, Cin, H, W = 2, 4, 16, 16
    Cout = 8
    x = jax.random.normal(kx, (N, Cin, H, W), jnp.float32)
    params = init_params(kp, Cin, Cout)

    out = jax.block_until_ready(down_forward(x, params))
    ref = down_reference(x, params)

    assert out.shape == (N, Cout, H // 2, W // 2), out.shape
    max_err = float(jnp.max(jnp.abs(out - ref)))
    # bf16 matmul operands + f32 accumulation: only summation-order / bf16
    # rounding-boundary differences vs the reference remain.
    if not jnp.allclose(out, ref, atol=2e-3, rtol=2e-3):
        raise AssertionError(f"Pallas/reference mismatch, max abs err={max_err}")
    print("KERNEL_OK")
</pallas_src>

<mosaic_0001>
module attributes {stable_mosaic.version = 11 : i64} {
  func.func @down_kernel(%arg0: i32, %arg1: memref<1x8x2x8x8xf32, #tpu.memory_space<vmem>>, %arg2: memref<9x4x8xbf16, #tpu.memory_space<vmem>>, %arg3: memref<1x8xf32, #tpu.memory_space<vmem>>, %arg4: memref<9x8x8xbf16, #tpu.memory_space<vmem>>, %arg5: memref<1x8xf32, #tpu.memory_space<vmem>>, %arg6: memref<1x8x8x8xf32, #tpu.memory_space<vmem>>, %arg7: memref<10x10x4xf32, #tpu.memory_space<vmem>>, %arg8: memref<10x10x8xf32, #tpu.memory_space<vmem>>) attributes {dimension_semantics = [#tpu.dimension_semantics<parallel>], iteration_bounds = array<i64: 2>, scalar_prefetch = 0 : i64, scratch_operands = 2 : i64, tpu.core_type = #tpu.core_type<tc>, window_params = [{transform_indices = @transform_0, window_bounds = array<i64: 1, 8, 2, 8, 8>}, {pipeline_mode = #tpu.pipeline_mode<synchronous>, transform_indices = @transform_1, window_bounds = array<i64: 9, 4, 8>}, {pipeline_mode = #tpu.pipeline_mode<synchronous>, transform_indices = @transform_2, window_bounds = array<i64: 1, 8>}, {pipeline_mode = #tpu.pipeline_mode<synchronous>, transform_indices = @transform_3, window_bounds = array<i64: 9, 8, 8>}, {pipeline_mode = #tpu.pipeline_mode<synchronous>, transform_indices = @transform_4, window_bounds = array<i64: 1, 8>}, {transform_indices = @transform_5, window_bounds = array<i64: 1, 8, 8, 8>}]} {
    %c0 = arith.constant 0 : index
    %c0_0 = arith.constant 0 : index
    %c0_1 = arith.constant 0 : index
    %c0_2 = arith.constant 0 : index
    %c0_3 = arith.constant 0 : index
    %0 = vector.load %arg1[%c0, %c0_0, %c0_1, %c0_2, %c0_3] : memref<1x8x2x8x8xf32, #tpu.memory_space<vmem>>, vector<1x8x1x8x8xf32>
    %1 = vector.shape_cast %0 : vector<1x8x1x8x8xf32> to vector<8x8x8xf32>
    %c0_4 = arith.constant 0 : index
    %c0_5 = arith.constant 0 : index
    %c1 = arith.constant 1 : index
    %c0_6 = arith.constant 0 : index
    %c0_7 = arith.constant 0 : index
    %2 = vector.load %arg1[%c0_4, %c0_5, %c1, %c0_6, %c0_7] : memref<1x8x2x8x8xf32, #tpu.memory_space<vmem>>, vector<1x8x1x8x8xf32>
    %3 = vector.shape_cast %2 : vector<1x8x1x8x8xf32> to vector<8x8x8xf32>
    %4 = arith.maximumf %1, %3 : vector<8x8x8xf32>
    %5 = vector.extract_strided_slice %4 {offsets = [0, 0, 0], sizes = [8, 8, 4], strides = [1, 1, 1]} : vector<8x8x8xf32> to vector<8x8x4xf32>
    %6 = vector.extract_strided_slice %4 {offsets = [0, 0, 4], sizes = [8, 8, 4], strides = [1, 1, 1]} : vector<8x8x8xf32> to vector<8x8x4xf32>
    %7 = arith.maximumf %5, %6 : vector<8x8x4xf32>
    %cst = arith.constant 0.000000e+00 : f32
    %8 = vector.broadcast %cst : f32 to vector<1x10x4xf32>
    %c0_8 = arith.constant 0 : index
    %c0_9 = arith.constant 0 : index
    %c0_10 = arith.constant 0 : index
    %9 = vector.load %arg7[%c0_8, %c0_9, %c0_10] : memref<10x10x4xf32, #tpu.memory_space<vmem>>, vector<1x10x4xf32>
    tpu.vector_store %arg7[%c0_8, %c0_9, %c0_10], %8 {strides = array<i32>} : memref<10x10x4xf32, #tpu.memory_space<vmem>>, vector<1x10x4xf32>,
    %cst_11 = arith.constant 0.000000e+00 : f32
    %10 = vector.broadcast %cst_11 : f32 to vector<1x10x4xf32>
    %c9 = arith.constant 9 : index
    %c0_12 = arith.constant 0 : index
    %c0_13 = arith.constant 0 : index
    %11 = vector.load %arg7[%c9, %c0_12, %c0_13] : memref<10x10x4xf32, #tpu.memory_space<vmem>>, vector<1x10x4xf32>
    tpu.vector_store %arg7[%c9, %c0_12, %c0_13], %10 {strides = array<i32>} : memref<10x10x4xf32, #tpu.memory_space<vmem>>, vector<1x10x4xf32>,
    %cst_14 = arith.constant 0.000000e+00 : f32
    %12 = vector.broadcast %cst_14 : f32 to vector<10x1x4xf32>
    %c0_15 = arith.constant 0 : index
    %c0_16 = arith.constant 0 : index
    %c0_17 = arith.constant 0 : index
    %13 = vector.load %arg7[%c0_15, %c0_16, %c0_17] : memref<10x10x4xf32, #tpu.memory_space<vmem>>, vector<10x1x4xf32>
    tpu.vector_store %arg7[%c0_15, %c0_16, %c0_17], %12 {strides = array<i32>} : memref<10x10x4xf32, #tpu.memory_space<vmem>>, vector<10x1x4xf32>,
    %cst_18 = arith.constant 0.000000e+00 : f32
    %14 = vector.broadcast %cst_18 : f32 to vector<10x1x4xf32>
    %c0_19 = arith.constant 0 : index
    %c9_20 = arith.constant 9 : index
    %c0_21 = arith.constant 0 : index
    %15 = vector.load %arg7[%c0_19, %c9_20, %c0_21] : memref<10x10x4xf32, #tpu.memory_space<vmem>>, vector<10x1x4xf32>
    tpu.vector_store %arg7[%c0_19, %c9_20, %c0_21], %14 {strides = array<i32>} : memref<10x10x4xf32, #tpu.memory_space<vmem>>, vector<10x1x4xf32>,
    %c1_22 = arith.constant 1 : index
    %c1_23 = arith.constant 1 : index
    %c0_24 = arith.constant 0 : index
    %16 = vector.load %arg7[%c1_22, %c1_23, %c0_24] : memref<10x10x4xf32, #tpu.memory_space<vmem>>, vector<8x8x4xf32>
    tpu.vector_store %arg7[%c1_22, %c1_23, %c0_24], %7 {strides = array<i32>} : memref<10x10x4xf32, #tpu.memory_space<vmem>>, vector<8x8x4xf32>,
    %cst_25 = arith.constant 0.000000e+00 : f32
    %17 = vector.broadcast %cst_25 : f32 to vector<64x8xf32>
    %c0_26 = arith.constant 0 : index
    %c0_27 = arith.constant 0 : index
    %c0_28 = arith.constant 0 : index
    %18 = vector.load %arg7[%c0_26, %c0_27, %c0_28] : memref<10x10x4xf32, #tpu.memory_space<vmem>>, vector<10x8x4xf32>
    %19 = vector.shape_cast %18 : vector<10x8x4xf32> to vector<80x4xf32>
    %20 = arith.truncf %19 : vector<80x4xf32> to vector<80x4xbf16>
    %21 = vector.extract_strided_slice %20 {offsets = [0, 0], sizes = [64, 4], strides = [1, 1]} : vector<80x4xbf16> to vector<64x4xbf16>
    %c0_29 = arith.constant 0 : index
    %c0_30 = arith.constant 0 : index
    %c0_31 = arith.constant 0 : index
    %22 = vector.load %arg2[%c0_29, %c0_30, %c0_31] : memref<9x4x8xbf16, #tpu.memory_space<vmem>>, vector<1x4x8xbf16>
    %23 = vector.shape_cast %22 : vector<1x4x8xbf16> to vector<4x8xbf16>
    %cst_32 = arith.constant dense<0.000000e+00> : vector<64x8xf32>
    %24 = tpu.matmul %21, %23, %cst_32 {dimension_numbers = #tpu.dot_dimension_numbers<[1], [0], [0], [1], [0, 0, 1, 1], [], []>} : vector<64x4xbf16>, vector<4x8xbf16>, vector<64x8xf32> -> vector<64x8xf32>
    %25 = arith.addf %17, %24 : vector<64x8xf32>
    %26 = vector.extract_strided_slice %20 {offsets = [8, 0], sizes = [64, 4], strides = [1, 1]} : vector<80x4xbf16> to vector<64x4xbf16>
    %c3 = arith.constant 3 : index
    %c0_33 = arith.constant 0 : index
    %c0_34 = arith.constant 0 : index
    %27 = vector.load %arg2[%c3, %c0_33, %c0_34] : memref<9x4x8xbf16, #tpu.memory_space<vmem>>, vector<1x4x8xbf16>
    %28 = vector.shape_cast %27 : vector<1x4x8xbf16> to vector<4x8xbf16>
    %cst_35 = arith.constant dense<0.000000e+00> : vector<64x8xf32>
    %29 = tpu.matmul %26, %28, %cst_35 {dimension_numbers = #tpu.dot_dimension_numbers<[1], [0], [0], [1], [0, 0, 1, 1], [], []>} : vector<64x4xbf16>, vector<4x8xbf16>, vector<64x8xf32> -> vector<64x8xf32>
    %30 = arith.addf %25, %29 : vector<64x8xf32>
    %31 = vector.extract_strided_slice %20 {offsets = [16, 0], sizes = [64, 4], strides = [1, 1]} : vector<80x4xbf16> to vector<64x4xbf16>
    %c6 = arith.constant 6 : index
    %c0_36 = arith.constant 0 : index
    %c0_37 = arith.constant 0 : index
    %32 = vector.load %arg2[%c6, %c0_36, %c0_37] : memref<9x4x8xbf16, #tpu.memory_space<vmem>>, vector<1x4x8xbf16>
    %33 = vector.shape_cast %32 : vector<1x4x8xbf16> to vector<4x8xbf16>
    %cst_38 = arith.constant dense<0.000000e+00> : vector<64x8xf32>
    %34 = tpu.matmul %31, %33, %cst_38 {dimension_numbers = #tpu.dot_dimension_numbers<[1], [0], [0], [1], [0, 0, 1, 1], [], []>} : vector<64x4xbf16>, vector<4x8xbf16>, vector<64x8xf32> -> vector<64x8xf32>
    %35 = arith.addf %30, %34 : vector<64x8xf32>
    %c0_39 = arith.constant 0 : index
    %c1_40 = arith.constant 1 : index
    %c0_41 = arith.constant 0 : index
    %36 = vector.load %arg7[%c0_39, %c1_40, %c0_41] : memref<10x10x4xf32, #tpu.memory_space<vmem>>, vector<10x8x4xf32>
    %37 = vector.shape_cast %36 : vector<10x8x4xf32> to vector<80x4xf32>
    %38 = arith.truncf %37 : vector<80x4xf32> to vector<80x4xbf16>
    %39 = vector.extract_strided_slice %38 {offsets = [0, 0], sizes = [64, 4], strides = [1, 1]} : vector<80x4xbf16> to vector<64x4xbf16>
    %c1_42 = arith.constant 1 : index
    %c0_43 = arith.constant 0 : index
    %c0_44 = arith.constant 0 : index
    %40 = vector.load %arg2[%c1_42, %c0_43, %c0_44] : memref<9x4x8xbf16, #tpu.memory_space<vmem>>, vector<1x4x8xbf16>
    %41 = vector.shape_cast %40 : vector<1x4x8xbf16> to vector<4x8xbf16>
    %cst_45 = arith.constant dense<0.000000e+00> : vector<64x8xf32>
    %42 = tpu.matmul %39, %41, %cst_45 {dimension_numbers = #tpu.dot_dimension_numbers<[1], [0], [0], [1], [0, 0, 1, 1], [], []>} : vector<64x4xbf16>, vector<4x8xbf16>, vector<64x8xf32> -> vector<64x8xf32>
    %43 = arith.addf %35, %42 : vector<64x8xf32>
    %44 = vector.extract_strided_slice %38 {offsets = [8, 0], sizes = [64, 4], strides = [1, 1]} : vector<80x4xbf16> to vector<64x4xbf16>
    %c4 = arith.constant 4 : index
    %c0_46 = arith.constant 0 : index
    %c0_47 = arith.constant 0 : index
    %45 = vector.load %arg2[%c4, %c0_46, %c0_47] : memref<9x4x8xbf16, #tpu.memory_space<vmem>>, vector<1x4x8xbf16>
    %46 = vector.shape_cast %45 : vector<1x4x8xbf16> to vector<4x8xbf16>
    %cst_48 = arith.constant dense<0.000000e+00> : vector<64x8xf32>
    %47 = tpu.matmul %44, %46, %cst_48 {dimension_numbers = #tpu.dot_dimension_numbers<[1], [0], [0], [1], [0, 0, 1, 1], [], []>} : vector<64x4xbf16>, vector<4x8xbf16>, vector<64x8xf32> -> vector<64x8xf32>
    %48 = arith.addf %43, %47 : vector<64x8xf32>
    %49 = vector.extract_strided_slice %38 {offsets = [16, 0], sizes = [64, 4], strides = [1, 1]} : vector<80x4xbf16> to vector<64x4xbf16>
    %c7 = arith.constant 7 : index
    %c0_49 = arith.constant 0 : index
    %c0_50 = arith.constant 0 : index
    %50 = vector.load %arg2[%c7, %c0_49, %c0_50] : memref<9x4x8xbf16, #tpu.memory_space<vmem>>, vector<1x4x8xbf16>
    %51 = vector.shape_cast %50 : vector<1x4x8xbf16> to vector<4x8xbf16>
    %cst_51 = arith.constant dense<0.000000e+00> : vector<64x8xf32>
    %52 = tpu.matmul %49, %51, %cst_51 {dimension_numbers = #tpu.dot_dimension_numbers<[1], [0], [0], [1], [0, 0, 1, 1], [], []>} : vector<64x4xbf16>, vector<4x8xbf16>, vector<64x8xf32> -> vector<64x8xf32>
    %53 = arith.addf %48, %52 : vector<64x8xf32>
    %c0_52 = arith.constant 0 : index
    %c2 = arith.constant 2 : index
    %c0_53 = arith.constant 0 : index
    %54 = vector.load %arg7[%c0_52, %c2, %c0_53] : memref<10x10x4xf32, #tpu.memory_space<vmem>>, vector<10x8x4xf32>
    %55 = vector.shape_cast %54 : vector<10x8x4xf32> to vector<80x4xf32>
    %56 = arith.truncf %55 : vector<80x4xf32> to vector<80x4xbf16>
    %57 = vector.extract_strided_slice %56 {offsets = [0, 0], sizes = [64, 4], strides = [1, 1]} : vector<80x4xbf16> to vector<64x4xbf16>
    %c2_54 = arith.constant 2 : index
    %c0_55 = arith.constant 0 : index
    %c0_56 = arith.constant 0 : index
    %58 = vector.load %arg2[%c2_54, %c0_55, %c0_56] : memref<9x4x8xbf16, #tpu.memory_space<vmem>>, vector<1x4x8xbf16>
    %59 = vector.shape_cast %58 : vector<1x4x8xbf16> to vector<4x8xbf16>
    %cst_57 = arith.constant dense<0.000000e+00> : vector<64x8xf32>
    %60 = tpu.matmul %57, %59, %cst_57 {dimension_numbers = #tpu.dot_dimension_numbers<[1], [0], [0], [1], [0, 0, 1, 1], [], []>} : vector<64x4xbf16>, vector<4x8xbf16>, vector<64x8xf32> -> vector<64x8xf32>
    %61 = arith.addf %53, %60 : vector<64x8xf32>
    %62 = vector.extract_strided_slice %56 {offsets = [8, 0], sizes = [64, 4], strides = [1, 1]} : vector<80x4xbf16> to vector<64x4xbf16>
    %c5 = arith.constant 5 : index
    %c0_58 = arith.constant 0 : index
    %c0_59 = arith.constant 0 : index
    %63 = vector.load %arg2[%c5, %c0_58, %c0_59] : memref<9x4x8xbf16, #tpu.memory_space<vmem>>, vector<1x4x8xbf16>
    %64 = vector.shape_cast %63 : vector<1x4x8xbf16> to vector<4x8xbf16>
    %cst_60 = arith.constant dense<0.000000e+00> : vector<64x8xf32>
    %65 = tpu.matmul %62, %64, %cst_60 {dimension_numbers = #tpu.dot_dimension_numbers<[1], [0], [0], [1], [0, 0, 1, 1], [], []>} : vector<64x4xbf16>, vector<4x8xbf16>, vector<64x8xf32> -> vector<64x8xf32>
    %66 = arith.addf %61, %65 : vector<64x8xf32>
    %67 = vector.extract_strided_slice %56 {offsets = [16, 0], sizes = [64, 4], strides = [1, 1]} : vector<80x4xbf16> to vector<64x4xbf16>
    %c8 = arith.constant 8 : index
    %c0_61 = arith.constant 0 : index
    %c0_62 = arith.constant 0 : index
    %68 = vector.load %arg2[%c8, %c0_61, %c0_62] : memref<9x4x8xbf16, #tpu.memory_space<vmem>>, vector<1x4x8xbf16>
    %69 = vector.shape_cast %68 : vector<1x4x8xbf16> to vector<4x8xbf16>
    %cst_63 = arith.constant dense<0.000000e+00> : vector<64x8xf32>
    %70 = tpu.matmul %67, %69, %cst_63 {dimension_numbers = #tpu.dot_dimension_numbers<[1], [0], [0], [1], [0, 0, 1, 1], [], []>} : vector<64x4xbf16>, vector<4x8xbf16>, vector<64x8xf32> -> vector<64x8xf32>
    %71 = arith.addf %66, %70 : vector<64x8xf32>
    %c0_64 = arith.constant 0 : index
    %c0_65 = arith.constant 0 : index
    %72 = vector.load %arg3[%c0_64, %c0_65] : memref<1x8xf32, #tpu.memory_space<vmem>>, vector<1x8xf32>
    %73 = vector.broadcast %72 : vector<1x8xf32> to vector<64x8xf32>
    %74 = arith.addf %71, %73 : vector<64x8xf32>
    %cst_66 = arith.constant 0.000000e+00 : f32
    %75 = vector.broadcast %cst_66 : f32 to vector<64x8xf32>
    %76 = arith.maximumf %74, %75 : vector<64x8xf32>
    %77 = vector.shape_cast %76 : vector<64x8xf32> to vector<8x8x8xf32>
    %cst_67 = arith.constant 0.000000e+00 : f32
    %78 = vector.broadcast %cst_67 : f32 to vector<1x10x8xf32>
    %c0_68 = arith.constant 0 : index
    %c0_69 = arith.constant 0 : index
    %c0_70 = arith.constant 0 : index
    %79 = vector.load %arg8[%c0_68, %c0_69, %c0_70] : memref<10x10x8xf32, #tpu.memory_space<vmem>>, vector<1x10x8xf32>
    tpu.vector_store %arg8[%c0_68, %c0_69, %c0_70], %78 {strides = array<i32>} : memref<10x10x8xf32, #tpu.memory_space<vmem>>, vector<1x10x8xf32>,
    %cst_71 = arith.constant 0.000000e+00 : f32
    %80 = vector.broadcast %cst_71 : f32 to vector<1x10x8xf32>
    %c9_72 = arith.constant 9 : index
    %c0_73 = arith.constant 0 : index
    %c0_74 = arith.constant 0 : index
    %81 = vector.load %arg8[%c9_72, %c0_73, %c0_74] : memref<10x10x8xf32, #tpu.memory_space<vmem>>, vector<1x10x8xf32>
    tpu.vector_store %arg8[%c9_72, %c0_73, %c0_74], %80 {strides = array<i32>} : memref<10x10x8xf32, #tpu.memory_space<vmem>>, vector<1x10x8xf32>,
    %cst_75 = arith.constant 0.000000e+00 : f32
    %82 = vector.broadcast %cst_75 : f32 to vector<10x1x8xf32>
    %c0_76 = arith.constant 0 : index
    %c0_77 = arith.constant 0 : index
    %c0_78 = arith.constant 0 : index
    %83 = vector.load %arg8[%c0_76, %c0_77, %c0_78] : memref<10x10x8xf32, #tpu.memory_space<vmem>>, vector<10x1x8xf32>
    tpu.vector_store %arg8[%c0_76, %c0_77, %c0_78], %82 {strides = array<i32>} : memref<10x10x8xf32, #tpu.memory_space<vmem>>, vector<10x1x8xf32>,
    %cst_79 = arith.constant 0.000000e+00 : f32
    %84 = vector.broadcast %cst_79 : f32 to vector<10x1x8xf32>
    %c0_80 = arith.constant 0 : index
    %c9_81 = arith.constant 9 : index
    %c0_82 = arith.constant 0 : index
    %85 = vector.load %arg8[%c0_80, %c9_81, %c0_82] : memref<10x10x8xf32, #tpu.memory_space<vmem>>, vector<10x1x8xf32>
    tpu.vector_store %arg8[%c0_80, %c9_81, %c0_82], %84 {strides = array<i32>} : memref<10x10x8xf32, #tpu.memory_space<vmem>>, vector<10x1x8xf32>,
    %c1_83 = arith.constant 1 : index
    %c1_84 = arith.constant 1 : index
    %c0_85 = arith.constant 0 : index
    %86 = vector.load %arg8[%c1_83, %c1_84, %c0_85] : memref<10x10x8xf32, #tpu.memory_space<vmem>>, vector<8x8x8xf32>
    tpu.vector_store %arg8[%c1_83, %c1_84, %c0_85], %77 {strides = array<i32>} : memref<10x10x8xf32, #tpu.memory_space<vmem>>, vector<8x8x8xf32>,
    %cst_86 = arith.constant 0.000000e+00 : f32
    %87 = vector.broadcast %cst_86 : f32 to vector<64x8xf32>
    %c0_87 = arith.constant 0 : index
    %c0_88 = arith.constant 0 : index
    %c0_89 = arith.constant 0 : index
    %88 = vector.load %arg8[%c0_87, %c0_88, %c0_89] : memref<10x10x8xf32, #tpu.memory_space<vmem>>, vector<10x8x8xf32>
    %89 = vector.shape_cast %88 : vector<10x8x8xf32> to vector<80x8xf32>
    %90 = arith.truncf %89 : vector<80x8xf32> to vector<80x8xbf16>
    %91 = vector.extract_strided_slice %90 {offsets = [0, 0], sizes = [64, 8], strides = [1, 1]} : vector<80x8xbf16> to vector<64x8xbf16>
    %c0_90 = arith.constant 0 : index
    %c0_91 = arith.constant 0 : index
    %c0_92 = arith.constant 0 : index
    %92 = vector.load %arg4[%c0_90, %c0_91, %c0_92] : memref<9x8x8xbf16, #tpu.memory_space<vmem>>, vector<1x8x8xbf16>
    %93 = vector.shape_cast %92 : vector<1x8x8xbf16> to vector<8x8xbf16>
    %cst_93 = arith.constant dense<0.000000e+00> : vector<64x8xf32>
    %94 = tpu.matmul %91, %93, %cst_93 {dimension_numbers = #tpu.dot_dimension_numbers<[1], [0], [0], [1], [0, 0, 1, 1], [], []>} : vector<64x8xbf16>, vector<8x8xbf16>, vector<64x8xf32> -> vector<64x8xf32>
    %95 = arith.addf %87, %94 : vector<64x8xf32>
    %96 = vector.extract_strided_slice %90 {offsets = [8, 0], sizes = [64, 8], strides = [1, 1]} : vector<80x8xbf16> to vector<64x8xbf16>
    %c3_94 = arith.constant 3 : index
    %c0_95 = arith.constant 0 : index
    %c0_96 = arith.constant 0 : index
    %97 = vector.load %arg4[%c3_94, %c0_95, %c0_96] : memref<9x8x8xbf16, #tpu.memory_space<vmem>>, vector<1x8x8xbf16>
    %98 = vector.shape_cast %97 : vector<1x8x8xbf16> to vector<8x8xbf16>
    %cst_97 = arith.constant dense<0.000000e+00> : vector<64x8xf32>
    %99 = tpu.matmul %96, %98, %cst_97 {dimension_numbers = #tpu.dot_dimension_numbers<[1], [0], [0], [1], [0, 0, 1, 1], [], []>} : vector<64x8xbf16>, vector<8x8xbf16>, vector<64x8xf32> -> vector<64x8xf32>
    %100 = arith.addf %95, %99 : vector<64x8xf32>
    %101 = vector.extract_strided_slice %90 {offsets = [16, 0], sizes = [64, 8], strides = [1, 1]} : vector<80x8xbf16> to vector<64x8xbf16>
    %c6_98 = arith.constant 6 : index
    %c0_99 = arith.constant 0 : index
    %c0_100 = arith.constant 0 : index
    %102 = vector.load %arg4[%c6_98, %c0_99, %c0_100] : memref<9x8x8xbf16, #tpu.memory_space<vmem>>, vector<1x8x8xbf16>
    %103 = vector.shape_cast %102 : vector<1x8x8xbf16> to vector<8x8xbf16>
    %cst_101 = arith.constant dense<0.000000e+00> : vector<64x8xf32>
    %104 = tpu.matmul %101, %103, %cst_101 {dimension_numbers = #tpu.dot_dimension_numbers<[1], [0], [0], [1], [0, 0, 1, 1], [], []>} : vector<64x8xbf16>, vector<8x8xbf16>, vector<64x8xf32> -> vector<64x8xf32>
    %105 = arith.addf %100, %104 : vector<64x8xf32>
    %c0_102 = arith.constant 0 : index
    %c1_103 = arith.constant 1 : index
    %c0_104 = arith.constant 0 : index
    %106 = vector.load %arg8[%c0_102, %c1_103, %c0_104] : memref<10x10x8xf32, #tpu.memory_space<vmem>>, vector<10x8x8xf32>
    %107 = vector.shape_cast %106 : vector<10x8x8xf32> to vector<80x8xf32>
    %108 = arith.truncf %107 : vector<80x8xf32> to vector<80x8xbf16>
    %109 = vector.extract_strided_slice %108 {offsets = [0, 0], sizes = [64, 8], strides = [1, 1]} : vector<80x8xbf16> to vector<64x8xbf16>
    %c1_105 = arith.constant 1 : index
    %c0_106 = arith.constant 0 : index
    %c0_107 = arith.constant 0 : index
    %110 = vector.load %arg4[%c1_105, %c0_106, %c0_107] : memref<9x8x8xbf16, #tpu.memory_space<vmem>>, vector<1x8x8xbf16>
    %111 = vector.shape_cast %110 : vector<1x8x8xbf16> to vector<8x8xbf16>
    %cst_108 = arith.constant dense<0.000000e+00> : vector<64x8xf32>
    %112 = tpu.matmul %109, %111, %cst_108 {dimension_numbers = #tpu.dot_dimension_numbers<[1], [0], [0], [1], [0, 0, 1, 1], [], []>} : vector<64x8xbf16>, vector<8x8xbf16>, vector<64x8xf32> -> vector<64x8xf32>
    %113 = arith.addf %105, %112 : vector<64x8xf32>
    %114 = vector.extract_strided_slice %108 {offsets = [8, 0], sizes = [64, 8], strides = [1, 1]} : vector<80x8xbf16> to vector<64x8xbf16>
    %c4_109 = arith.constant 4 : index
    %c0_110 = arith.constant 0 : index
    %c0_111 = arith.constant 0 : index
    %115 = vector.load %arg4[%c4_109, %c0_110, %c0_111] : memref<9x8x8xbf16, #tpu.memory_space<vmem>>, vector<1x8x8xbf16>
    %116 = vector.shape_cast %115 : vector<1x8x8xbf16> to vector<8x8xbf16>
    %cst_112 = arith.constant dense<0.000000e+00> : vector<64x8xf32>
    %117 = tpu.matmul %114, %116, %cst_112 {dimension_numbers = #tpu.dot_dimension_numbers<[1], [0], [0], [1], [0, 0, 1, 1], [], []>} : vector<64x8xbf16>, vector<8x8xbf16>, vector<64x8xf32> -> vector<64x8xf32>
    %118 = arith.addf %113, %117 : vector<64x8xf32>
    %119 = vector.extract_strided_slice %108 {offsets = [16, 0], sizes = [64, 8], strides = [1, 1]} : vector<80x8xbf16> to vector<64x8xbf16>
    %c7_113 = arith.constant 7 : index
    %c0_114 = arith.constant 0 : index
    %c0_115 = arith.constant 0 : index
    %120 = vector.load %arg4[%c7_113, %c0_114, %c0_115] : memref<9x8x8xbf16, #tpu.memory_space<vmem>>, vector<1x8x8xbf16>
    %121 = vector.shape_cast %120 : vector<1x8x8xbf16> to vector<8x8xbf16>
    %cst_116 = arith.constant dense<0.000000e+00> : vector<64x8xf32>
    %122 = tpu.matmul %119, %121, %cst_116 {dimension_numbers = #tpu.dot_dimension_numbers<[1], [0], [0], [1], [0, 0, 1, 1], [], []>} : vector<64x8xbf16>, vector<8x8xbf16>, vector<64x8xf32> -> vector<64x8xf32>
    %123 = arith.addf %118, %122 : vector<64x8xf32>
    %c0_117 = arith.constant 0 : index
    %c2_118 = arith.constant 2 : index
    %c0_119 = arith.constant 0 : index
    %124 = vector.load %arg8[%c0_117, %c2_118, %c0_119] : memref<10x10x8xf32, #tpu.memory_space<vmem>>, vector<10x8x8xf32>
    %125 = vector.shape_cast %124 : vector<10x8x8xf32> to vector<80x8xf32>
    %126 = arith.truncf %125 : vector<80x8xf32> to vector<80x8xbf16>
    %127 = vector.extract_strided_slice %126 {offsets = [0, 0], sizes = [64, 8], strides = [1, 1]} : vector<80x8xbf16> to vector<64x8xbf16>
    %c2_120 = arith.constant 2 : index
    %c0_121 = arith.constant 0 : index
    %c0_122 = arith.constant 0 : index
    %128 = vector.load %arg4[%c2_120, %c0_121, %c0_122] : memref<9x8x8xbf16, #tpu.memory_space<vmem>>, vector<1x8x8xbf16>
    %129 = vector.shape_cast %128 : vector<1x8x8xbf16> to vector<8x8xbf16>
    %cst_123 = arith.constant dense<0.000000e+00> : vector<64x8xf32>
    %130 = tpu.matmul %127, %129, %cst_123 {dimension_numbers = #tpu.dot_dimension_numbers<[1], [0], [0], [1], [0, 0, 1, 1], [], []>} : vector<64x8xbf16>, vector<8x8xbf16>, vector<64x8xf32> -> vector<64x8xf32>
    %131 = arith.addf %123, %130 : vector<64x8xf32>
    %132 = vector.extract_strided_slice %126 {offsets = [8, 0], sizes = [64, 8], strides = [1, 1]} : vector<80x8xbf16> to vector<64x8xbf16>
    %c5_124 = arith.constant 5 : index
    %c0_125 = arith.constant 0 : index
    %c0_126 = arith.constant 0 : index
    %133 = vector.load %arg4[%c5_124, %c0_125, %c0_126] : memref<9x8x8xbf16, #tpu.memory_space<vmem>>, vector<1x8x8xbf16>
    %134 = vector.shape_cast %133 : vector<1x8x8xbf16> to vector<8x8xbf16>
    %cst_127 = arith.constant dense<0.000000e+00> : vector<64x8xf32>
    %135 = tpu.matmul %132, %134, %cst_127 {dimension_numbers = #tpu.dot_dimension_numbers<[1], [0], [0], [1], [0, 0, 1, 1], [], []>} : vector<64x8xbf16>, vector<8x8xbf16>, vector<64x8xf32> -> vector<64x8xf32>
    %136 = arith.addf %131, %135 : vector<64x8xf32>
    %137 = vector.extract_strided_slice %126 {offsets = [16, 0], sizes = [64, 8], strides = [1, 1]} : vector<80x8xbf16> to vector<64x8xbf16>
    %c8_128 = arith.constant 8 : index
    %c0_129 = arith.constant 0 : index
    %c0_130 = arith.constant 0 : index
    %138 = vector.load %arg4[%c8_128, %c0_129, %c0_130] : memref<9x8x8xbf16, #tpu.memory_space<vmem>>, vector<1x8x8xbf16>
    %139 = vector.shape_cast %138 : vector<1x8x8xbf16> to vector<8x8xbf16>
    %cst_131 = arith.constant dense<0.000000e+00> : vector<64x8xf32>
    %140 = tpu.matmul %137, %139, %cst_131 {dimension_numbers = #tpu.dot_dimension_numbers<[1], [0], [0], [1], [0, 0, 1, 1], [], []>} : vector<64x8xbf16>, vector<8x8xbf16>, vector<64x8xf32> -> vector<64x8xf32>
    %141 = arith.addf %136, %140 : vector<64x8xf32>
    %c0_132 = arith.constant 0 : index
    %c0_133 = arith.constant 0 : index
    %142 = vector.load %arg5[%c0_132, %c0_133] : memref<1x8xf32, #tpu.memory_space<vmem>>, vector<1x8xf32>
    %143 = vector.broadcast %142 : vector<1x8xf32> to vector<64x8xf32>
    %144 = arith.addf %141, %143 : vector<64x8xf32>
    %cst_134 = arith.constant 0.000000e+00 : f32
    %145 = vector.broadcast %cst_134 : f32 to vector<64x8xf32>
    %146 = arith.maximumf %144, %145 : vector<64x8xf32>
    %147 = vector.shape_cast %146 : vector<64x8xf32> to vector<1x8x8x8xf32>
    %c0_135 = arith.constant 0 : index
    %c0_136 = arith.constant 0 : index
    %c0_137 = arith.constant 0 : index
    %c0_138 = arith.constant 0 : index
    %148 = vector.load %arg6[%c0_135, %c0_136, %c0_137, %c0_138] : memref<1x8x8x8xf32, #tpu.memory_space<vmem>>, vector<1x8x8x8xf32>
    tpu.vector_store %arg6[%c0_135, %c0_136, %c0_137, %c0_138], %147 {strides = array<i32>} : memref<1x8x8x8xf32, #tpu.memory_space<vmem>>, vector<1x8x8x8xf32>,
    return
  }
  func.func @transform_0(%arg0: i32) -> (i32, i32, i32, i32, i32) {
    %c0_i32 = arith.constant 0 : i32
    %c0_i32_0 = arith.constant 0 : i32
    %c0_i32_1 = arith.constant 0 : i32
    %c0_i32_2 = arith.constant 0 : i32
    %c0_i32_3 = arith.constant 0 : i32
    return %arg0, %c0_i32, %c0_i32_0, %c0_i32_1, %c0_i32_2 : i32, i32, i32, i32, i32
  }
  func.func @transform_1(%arg0: i32) -> (i32, i32, i32) {
    %c0_i32 = arith.constant 0 : i32
    %c0_i32_0 = arith.constant 0 : i32
    %c0_i32_1 = arith.constant 0 : i32
    %c0_i32_2 = arith.constant 0 : i32
    return %c0_i32, %c0_i32_0, %c0_i32_1 : i32, i32, i32
  }
  func.func @transform_2(%arg0: i32) -> (i32, i32) {
    %c0_i32 = arith.constant 0 : i32
    %c0_i32_0 = arith.constant 0 : i32
    %c0_i32_1 = arith.constant 0 : i32
    return %c0_i32, %c0_i32_0 : i32, i32
  }
  func.func @transform_3(%arg0: i32) -> (i32, i32, i32) {
    %c0_i32 = arith.constant 0 : i32
    %c0_i32_0 = arith.constant 0 : i32
    %c0_i32_1 = arith.constant 0 : i32
    %c0_i32_2 = arith.constant 0 : i32
    return %c0_i32, %c0_i32_0, %c0_i32_1 : i32, i32, i32
  }
  func.func @transform_4(%arg0: i32) -> (i32, i32) {
    %c0_i32 = arith.constant 0 : i32
    %c0_i32_0 = arith.constant 0 : i32
    %c0_i32_1 = arith.constant 0 : i32
    return %c0_i32, %c0_i32_0 : i32, i32
  }
  func.func @transform_5(%arg0: i32) -> (i32, i32, i32, i32) {
    %c0_i32 = arith.constant 0 : i32
    %c0_i32_0 = arith.constant 0 : i32
    %c0_i32_1 = arith.constant 0 : i32
    %c0_i32_2 = arith.constant 0 : i32
    return %arg0, %c0_i32, %c0_i32_0, %c0_i32_1 : i32, i32, i32, i32
  }
}

</mosaic_0001>

<llo_original>
// kernel: tpu_custom_call.1
$region0: #{tpu_custom_call.1}
  #allocation0 [shape = 'u32[]', space=smem, size = 0x4, offset = 0x4, fixed_abs, tag = 'smem constant byte address 0x4 - core index']
  #allocation1 [shape = 'u32[144,128]{1,0:T(1,128)}', space=vmem, size = 0x12000, scoped, tag = 'internal scratch']
  #allocation2 [shape = 'f32[10,10,4]{2,1,0:T(8,128)}', space=vmem, size = 0x14000, scoped, tag = 'scratch operand']
  #allocation3 [shape = 'f32[10,10,8]{2,1,0:T(8,128)}', space=vmem, size = 0x14000, scoped, tag = 'scratch operand']
  %s0 = inlined_call_operand.hbm [shape: f32[2,8,2,8,8], index: 0, kind: input, shape index: {}]
  %s1 = inlined_call_operand.vmem [shape: bf16[9,4,8], index: 1, kind: input, shape index: {}]
  %s2 = inlined_call_operand.vmem [shape: f32[1,8], index: 2, kind: input, shape index: {}]
  %s3 = inlined_call_operand.vmem [shape: bf16[9,8,8], index: 3, kind: input, shape index: {}]
  %s4 = inlined_call_operand.vmem [shape: f32[1,8], index: 4, kind: input, shape index: {}]
  %s5 = inlined_call_operand.hbm [shape: f32[2,8,8,8], index: 5, kind: output, shape index: {}]
  %s6 = sld [smem:[#allocation0]]
  $region57: #{tpu_custom_call.1} parent=0
    _
  %s8 = ssub.s32 1, %s6
  %s9 = scalar_select 0, %s8, %s6
  $region1: #{tpu_custom_call.1} parent=0
    #allocation4 [shape = 'u8[131072]{0}', space=vmem, size = 0x20000, scoped, tag = 'input window, operand 0']
    #allocation5 [shape = 's32[2]{0}', space=sflag, size = 0x8, scoped, tag = 'scoped memory for tpu_custom_call.1']
    #allocation6 [shape = 's32[2]{0}', space=sflag, size = 0x8, scoped, tag = 'scoped memory for tpu_custom_call.1']
    #allocation7 [shape = 'u8[65536]{0}', space=vmem, size = 0x10000, scoped, tag = 'output window, operand 0']
    %10 = vsyncpa [#allocation5], 0
    %s11 = scalar_lea.sflag [#allocation5], 1
    %12 = vsyncpa %s11, 0
    %13 = vsyncpa [#allocation6], 0
    %s14 = scalar_lea.sflag [#allocation6], 1
    %15 = vsyncpa %s14, 0
    loop: start=0, step=1, limit=4
    $region2: #{tpu_custom_call.1} parent=1 // loop_pre_header
      _
    $region3: #{tpu_custom_call.1} parent=1 // loop_header
      %s17 = sphi 0, %s21
      %p18 = scmp.ge.s32.totalorder %s17, 4
      %s27 = sphi 0, %s29
      %s30 = sphi 0, %s27
      %s31 = sphi 0, %s30
      %s47 = sphi 0, %s31
      %s51 = sphi 0, %s51
      %s53 = sphi 0, %s51
      %s54 = sphi 0, %s53
      %s68 = sphi 0, %s54
      %s72 = sphi 0, %s72
      %s74 = sphi 0, %s72
      %s75 = sphi 0, %s74
      %s89 = sphi 0, %s75
      %s93 = sphi 0, %s93
      %s95 = sphi 0, %s93
      %s96 = sphi 0, %s95
      %s110 = sphi 0, %s96
      %s114 = sphi 0, %s114
      %s116 = sphi 0, %s114
      %s117 = sphi 0, %s116
      %s131 = sphi 0, %s117
      %s137 = sphi 0, %s139
      %s140 = sphi 0, %s137
      %s141 = sphi 0, %s140
      %s157 = sphi 0, %s141
    $region4: #{tpu_custom_call.1} parent=1 // loop_header_branch
      %20 = sbr.rel (%p18) target = $region8
    $region5: #{tpu_custom_call.1} parent=1 // loop_body
      %s22 = ssub.s32 %s17, 1
      %s23 = ssub.s32 %s17, 2
      %s24 = sadd.s32 %s17, 1
      %s25 = ssub.s32 %s17, %s24
      %p26 = scmp.eq.s32.totalorder %s25, 0
      %s28 = sadd.s32 %s27, 1
      %s29 = scalar_select %p26, %s27, %s28
      %p32 = pneg %p26
      %p33 = scmp.eq.s32.totalorder %s17, 1
      %p34 = por %p32, %p33
      %p35 = scmp.ne.s32.totalorder %s27, %s30
      %p36 = scmp.eq.s32.totalorder %s17, 0
      %p37 = por %p35, %p36
      %p38 = scmp.ne.s32.totalorder %s27, %s30
      %p39 = scmp.eq.s32.totalorder %s22, 1
      %p40 = por %p38, %p39
      %p41 = scmp.ne.s32.totalorder %s30, %s31
      %p42 = scmp.eq.s32.totalorder %s22, 0
      %p43 = por %p41, %p42
      %p44 = scmp.ne.s32.totalorder %s30, %s31
      %p45 = scmp.eq.s32.totalorder %s23, 1
      %p46 = por %p44, %p45
      %p48 = scmp.ne.s32.totalorder %s31, %s47
      %p49 = scmp.eq.s32.totalorder %s23, 0
      %p50 = por %p48, %p49
      %s52 = sadd.s32 %s51, 1
      %p55 = scmp.eq.s32.totalorder %s17, 1
      %p56 = scmp.ne.s32.totalorder %s51, %s53
      %p57 = scmp.eq.s32.totalorder %s17, 0
      %p58 = por %p56, %p57
      %p59 = scmp.ne.s32.totalorder %s51, %s53
      %p60 = scmp.eq.s32.totalorder %s22, 1
      %p61 = por %p59, %p60
      %p62 = scmp.ne.s32.totalorder %s53, %s54
      %p63 = scmp.eq.s32.totalorder %s22, 0
      %p64 = por %p62, %p63
      %p65 = scmp.ne.s32.totalorder %s53, %s54
      %p66 = scmp.eq.s32.totalorder %s23, 1
      %p67 = por %p65, %p66
      %p69 = scmp.ne.s32.totalorder %s54, %s68
      %p70 = scmp.eq.s32.totalorder %s23, 0
      %p71 = por %p69, %p70
      %s73 = sadd.s32 %s72, 1
      %p76 = scmp.eq.s32.totalorder %s17, 1
      %p77 = scmp.ne.s32.totalorder %s72, %s74
      %p78 = scmp.eq.s32.totalorder %s17, 0
      %p79 = por %p77, %p78
      %p80 = scmp.ne.s32.totalorder %s72, %s74
      %p81 = scmp.eq.s32.totalorder %s22, 1
      %p82 = por %p80, %p81
      %p83 = scmp.ne.s32.totalorder %s74, %s75
      %p84 = scmp.eq.s32.totalorder %s22, 0
      %p85 = por %p83, %p84
      %p86 = scmp.ne.s32.totalorder %s74, %s75
      %p87 = scmp.eq.s32.totalorder %s23, 1
      %p88 = por %p86, %p87
      %p90 = scmp.ne.s32.totalorder %s75, %s89
      %p91 = scmp.eq.s32.totalorder %s23, 0
      %p92 = por %p90, %p91
      %s94 = sadd.s32 %s93, 1
      %p97 = scmp.eq.s32.totalorder %s17, 1
      %p98 = scmp.ne.s32.totalorder %s93, %s95
      %p99 = scmp.eq.s32.totalorder %s17, 0
      %p100 = por %p98, %p99
      %p101 = scmp.ne.s32.totalorder %s93, %s95
      %p102 = scmp.eq.s32.totalorder %s22, 1
      %p103 = por %p101, %p102
      %p104 = scmp.ne.s32.totalorder %s95, %s96
      %p105 = scmp.eq.s32.totalorder %s22, 0
      %p106 = por %p104, %p105
      %p107 = scmp.ne.s32.totalorder %s95, %s96
      %p108 = scmp.eq.s32.totalorder %s23, 1
      %p109 = por %p107, %p108
      %p111 = scmp.ne.s32.totalorder %s96, %s110
      %p112 = scmp.eq.s32.totalorder %s23, 0
      %p113 = por %p111, %p112
      %s115 = sadd.s32 %s114, 1
      %p118 = scmp.eq.s32.totalorder %s17, 1
      %p119 = scmp.ne.s32.totalorder %s114, %s116
      %p120 = scmp.eq.s32.totalorder %s17, 0
      %p121 = por %p119, %p120
      %p122 = scmp.ne.s32.totalorder %s114, %s116
      %p123 = scmp.eq.s32.totalorder %s22, 1
      %p124 = por %p122, %p123
      %p125 = scmp.ne.s32.totalorder %s116, %s117
      %p126 = scmp.eq.s32.totalorder %s22, 0
      %p127 = por %p125, %p126
      %p128 = scmp.ne.s32.totalorder %s116, %s117
      %p129 = scmp.eq.s32.totalorder %s23, 1
      %p130 = por %p128, %p129
      %p132 = scmp.ne.s32.totalorder %s117, %s131
      %p133 = scmp.eq.s32.totalorder %s23, 0
      %p134 = por %p132, %p133
      %s135 = ssub.s32 %s17, %s24
      %p136 = scmp.eq.s32.totalorder %s135, 0
      %s138 = sadd.s32 %s137, 1
      %s139 = scalar_select %p136, %s137, %s138
      %p142 = pneg %p136
      %p143 = scmp.eq.s32.totalorder %s17, 1
      %p144 = por %p142, %p143
      %p145 = scmp.ne.s32.totalorder %s137, %s140
      %p146 = scmp.eq.s32.totalorder %s17, 0
      %p147 = por %p145, %p146
      %p148 = scmp.ne.s32.totalorder %s137, %s140
      %p149 = scmp.eq.s32.totalorder %s22, 1
      %p150 = por %p148, %p149
      %p151 = scmp.ne.s32.totalorder %s140, %s141
      %p152 = scmp.eq.s32.totalorder %s22, 0
      %p153 = por %p151, %p152
      %p154 = scmp.ne.s32.totalorder %s140, %s141
      %p155 = scmp.eq.s32.totalorder %s23, 1
      %p156 = por %p154, %p155
      %p158 = scmp.ne.s32.totalorder %s141, %s157
      %p159 = scmp.eq.s32.totalorder %s23, 0
      %p160 = por %p158, %p159
      %p161 = scmp.le.s32.totalorder 1, %s17
      %p162 = scmp.lt.s32.totalorder %s17, 3
      %p163 = pnand %p161, %p162
      %p164 = pneg %p163
      // Predicated region
      $region9: #{tpu_custom_call.1} parent=5 // pred_check
        _
      $region10: #{tpu_custom_call.1} parent=5 // pred_check_branch
        %166 = sbr.rel (%p163) target = $region12
      $region11: #{tpu_custom_call.1} parent=5 // pred_region
        %s167 = ssub.s32 %s17, 1
        // Predicated region
        $region13: #{tpu_custom_call.1} parent=11 // pred_check
          %p168 = pneg %p64
        $region14: #{tpu_custom_call.1} parent=11 // pred_check_branch
          %170 = sbr.rel (%p168) target = $region16
        $region15: #{tpu_custom_call.1} parent=11 // pred_region
          _
        $region16: #{tpu_custom_call.1} parent=11 // pred_fallthru
          _
        // Predicated region
        $region17: #{tpu_custom_call.1} parent=11 // pred_check
          %p171 = pneg %p85
        $region18: #{tpu_custom_call.1} parent=11 // pred_check_branch
          %173 = sbr.rel (%p171) target = $region20
        $region19: #{tpu_custom_call.1} parent=11 // pred_region
          _
        $region20: #{tpu_custom_call.1} parent=11 // pred_fallthru
          _
        // Predicated region
        $region21: #{tpu_custom_call.1} parent=11 // pred_check
          %p174 = pneg %p106
        $region22: #{tpu_custom_call.1} parent=11 // pred_check_branch
          %176 = sbr.rel (%p174) target = $region24
        $region23: #{tpu_custom_call.1} parent=11 // pred_region
          _
        $region24: #{tpu_custom_call.1} parent=11 // pred_fallthru
          _
        // Predicated region
        $region25: #{tpu_custom_call.1} parent=11 // pred_check
          %p177 = pneg %p127
        $region26: #{tpu_custom_call.1} parent=11 // pred_check_branch
          %179 = sbr.rel (%p177) target = $region28
        $region27: #{tpu_custom_call.1} parent=11 // pred_region
          _
        $region28: #{tpu_custom_call.1} parent=11 // pred_fallthru
          _
      $region12: #{tpu_custom_call.1} parent=5 // pred_fallthru
        _
      %p180 = scmp.lt.s32.totalorder %s17, 2
      // Predicated region
      $region29: #{tpu_custom_call.1} parent=5 // pred_check
        %p181 = pneg %p180
      $region30: #{tpu_custom_call.1} parent=5 // pred_check_branch
        %183 = sbr.rel (%p181) target = $region32
      $region31: #{tpu_custom_call.1} parent=5 // pred_region
        // Predicated region
        $region33: #{tpu_custom_call.1} parent=31 // pred_check
          %p184 = pneg %p37
        $region34: #{tpu_custom_call.1} parent=31 // pred_check_branch
          %186 = sbr.rel (%p184) target = $region36
        $region35: #{tpu_custom_call.1} parent=31 // pred_region
          %s187 = sand.u32 %s27, 1
          %s188 = scalar_lea.sflag [#allocation5], %s187
          %s189 = sand.u32 %s27, 1
          %s190 = smul.addr %s189, 128
          %s191 = scalar_lea.vmem [#allocation4], %s190
          %s193 = ssub.s32 2048, 2048
          %194 = vsyncadd %s188, %s193
          %s195 = smul.addr %s17, 16
          %s196 = smul.addr %s195, 128
          %s197 = scalar_lea.hbm %s0, %s196
          %s198 = sshll.u32 %s191, 4
          %s199 = int_to_ptr.vmem [resolvable:$true] %s198
          %204 = dma.hbm_to_vmem [thread:$0]  %s197, 2048, %s199, %s188, 128, 128, 8
        $region36: #{tpu_custom_call.1} parent=31 // pred_fallthru
          _
      $region32: #{tpu_custom_call.1} parent=5 // pred_fallthru
        _
      %p205 = scmp.le.s32.totalorder 1, %s17
      %p206 = scmp.lt.s32.totalorder %s17, 3
      %p207 = pnand %p205, %p206
      %p208 = pneg %p207
      // Predicated region
      $region37: #{tpu_custom_call.1} parent=5 // pred_check
        _
      $region38: #{tpu_custom_call.1} parent=5 // pred_check_branch
        %210 = sbr.rel (%p207) target = $region40
      $region39: #{tpu_custom_call.1} parent=5 // pred_region
        %s211 = ssub.s32 %s17, 1
        %s212 = sand.u32 %s30, 1
        %s213 = scalar_lea.sflag [#allocation5], %s212
        %s214 = sand.u32 %s30, 1
        %s215 = smul.addr %s214, 128
        %s216 = scalar_lea.vmem [#allocation4], %s215
        // Predicated region
        $region41: #{tpu_custom_call.1} parent=39 // pred_check
          %p217 = pneg %p43
        $region42: #{tpu_custom_call.1} parent=39 // pred_check_branch
          %219 = sbr.rel (%p217) target = $region44
        $region43: #{tpu_custom_call.1} parent=39 // pred_region
          %220 = dma.done %s213, 2048
        $region44: #{tpu_custom_call.1} parent=39 // pred_fallthru
          _
        %s221 = sand.u32 %s30, 1
        %s222 = scalar_lea.sflag [#allocation5], %s221
        %s223 = sand.u32 %s30, 1
        %s224 = smul.addr %s223, 128
        %s225 = scalar_lea.vmem [#allocation4], %s224
        %p226 = pneg %p43
        %p227 = pneg %p40
        %p228 = pneg %p64
        %p229 = pneg %p61
        %p230 = pneg %p85
        %p231 = pneg %p82
        %p232 = pneg %p106
        %p233 = pneg %p103
        %p234 = pneg %p127
        %p235 = pneg %p124
        %p236 = pneg %p153
        %p237 = pneg %p150
        %s238 = sand.u32 %s140, 1
        %s239 = scalar_lea.sflag [#allocation6], %s238
        %s240 = sand.u32 %s140, 1
        %s241 = smul.addr %s240, 64
        %s242 = scalar_lea.vmem [#allocation7], %s241
        %v244 = vld [vmem:[%s216] sm:$0xff]
        %v245 = vld [vmem:[%s216 + $0x10] sm:$0xff]
        %v246 = vld [vmem:[%s216 + $0x20] sm:$0xff]
        %v247 = vld [vmem:[%s216 + $0x30] sm:$0xff]
        %v248 = vld [vmem:[%s216 + $0x40] sm:$0xff]
        %v249 = vld [vmem:[%s216 + $0x50] sm:$0xff]
        %v250 = vld [vmem:[%s216 + $0x60] sm:$0xff]
        %v251 = vld [vmem:[%s216 + $0x70] sm:$0xff]
        %s252 = scalar_lea.vmem %s216, 8 [#allocation4]
        %v253 = vld [vmem:[%s252] sm:$0xff]
        %v254 = vld [vmem:[%s252 + $0x10] sm:$0xff]
        %v255 = vld [vmem:[%s252 + $0x20] sm:$0xff]
        %v256 = vld [vmem:[%s252 + $0x30] sm:$0xff]
        %v257 = vld [vmem:[%s252 + $0x40] sm:$0xff]
        %v258 = vld [vmem:[%s252 + $0x50] sm:$0xff]
        %v259 = vld [vmem:[%s252 + $0x60] sm:$0xff]
        %v260 = vld [vmem:[%s252 + $0x70] sm:$0xff]
        %v261 = vmax.f32 %v244, %v253
        %v262 = vmax.f32 %v245, %v254
        %v263 = vmax.f32 %v246, %v255
        %v264 = vmax.f32 %v247, %v256
        %v265 = vmax.f32 %v248, %v257
        %v266 = vmax.f32 %v249, %v258
        %v267 = vmax.f32 %v250, %v259
        %v268 = vmax.f32 %v251, %v260
        %277 = vrot.lane.b32.xlu0 %v261, 124
        %v278 = vpop.permute.xlu0 %277
        %279 = vrot.lane.b32.xlu0 %v262, 124
        %v280 = vpop.permute.xlu0 %279
        %281 = vrot.lane.b32.xlu0 %v263, 124
        %v282 = vpop.permute.xlu0 %281
        %283 = vrot.lane.b32.xlu0 %v264, 124
        %v284 = vpop.permute.xlu0 %283
        %285 = vrot.lane.b32.xlu0 %v265, 124
        %v286 = vpop.permute.xlu0 %285
        %287 = vrot.lane.b32.xlu0 %v266, 124
        %v288 = vpop.permute.xlu0 %287
        %289 = vrot.lane.b32.xlu0 %v267, 124
        %v290 = vpop.permute.xlu0 %289
        %291 = vrot.lane.b32.xlu0 %v268, 124
        %v292 = vpop.permute.xlu0 %291
        %v301 = vmax.f32 %v261, %v278
        %v302 = vmax.f32 %v262, %v280
        %v303 = vmax.f32 %v263, %v282
        %v304 = vmax.f32 %v264, %v284
        %v305 = vmax.f32 %v265, %v286
        %v306 = vmax.f32 %v266, %v288
        %v307 = vmax.f32 %v267, %v290
        %v308 = vmax.f32 %v268, %v292
        %vm309 = vcmask 31744
        %310 = vst.msk [vmem:[#allocation2] sm:$0xff] %vm309, 0.0
        %vm311 = vcmask 25600
        %312 = vst.msk [vmem:[#allocation2 + $0x8] sm:$0x3] %vm311, 0.0
        %s313 = scalar_lea.vmem [#allocation2], 144
        %314 = vst.msk [vmem:[%s313] sm:$0xff] %vm309, 0.0
        %315 = vst.msk [vmem:[%s313 + $0x8] sm:$0x3] %vm311, 0.0
        %vm316 = vcmask 24576
        %317 = vst.msk [vmem:[#allocation2] sm:$0x1] %vm316, 0.0
        %318 = vst.msk [vmem:[#allocation2 + $0x10] sm:$0x1] %vm316, 0.0
        %319 = vst.msk [vmem:[#allocation2 + $0x20] sm:$0x1] %vm316, 0.0
        %320 = vst.msk [vmem:[#allocation2 + $0x30] sm:$0x1] %vm316, 0.0
        %321 = vst.msk [vmem:[#allocation2 + $0x40] sm:$0x1] %vm316, 0.0
        %322 = vst.msk [vmem:[#allocation2 + $0x50] sm:$0x1] %vm316, 0.0
        %323 = vst.msk [vmem:[#allocation2 + $0x60] sm:$0x1] %vm316, 0.0
        %324 = vst.msk [vmem:[#allocation2 + $0x70] sm:$0x1] %vm316, 0.0
        %325 = vst.msk [vmem:[#allocation2 + $0x80] sm:$0x1] %vm316, 0.0
        %326 = vst.msk [vmem:[#allocation2 + $0x90] sm:$0x1] %vm316, 0.0
        %327 = vst.msk [vmem:[#allocation2 + $0x9] sm:$0x1] %vm316, 0.0
        %328 = vst.msk [vmem:[#allocation2 + $0x19] sm:$0x1] %vm316, 0.0
        %329 = vst.msk [vmem:[#allocation2 + $0x29] sm:$0x1] %vm316, 0.0
        %330 = vst.msk [vmem:[#allocation2 + $0x39] sm:$0x1] %vm316, 0.0
        %331 = vst.msk [vmem:[#allocation2 + $0x49] sm:$0x1] %vm316, 0.0
        %332 = vst.msk [vmem:[#allocation2 + $0x59] sm:$0x1] %vm316, 0.0
        %333 = vst.msk [vmem:[#allocation2 + $0x69] sm:$0x1] %vm316, 0.0
        %334 = vst.msk [vmem:[#allocation2 + $0x79] sm:$0x1] %vm316, 0.0
        %335 = vst.msk [vmem:[#allocation2 + $0x89] sm:$0x1] %vm316, 0.0
        %336 = vst.msk [vmem:[#allocation2 + $0x99] sm:$0x1] %vm316, 0.0
        %s337 = scalar_lea.vmem [#allocation2], 16
        %338 = vst.msk [vmem:[%s337 + $0x1] sm:$0xff] %vm309, %v301
        %339 = vst.msk [vmem:[%s337 + $0x11] sm:$0xff] %vm309, %v302
        %340 = vst.msk [vmem:[%s337 + $0x21] sm:$0xff] %vm309, %v303
        %341 = vst.msk [vmem:[%s337 + $0x31] sm:$0xff] %vm309, %v304
        %342 = vst.msk [vmem:[%s337 + $0x41] sm:$0xff] %vm309, %v305
        %343 = vst.msk [vmem:[%s337 + $0x51] sm:$0xff] %vm309, %v306
        %344 = vst.msk [vmem:[%s337 + $0x61] sm:$0xff] %vm309, %v307
        %345 = vst.msk [vmem:[%s337 + $0x71] sm:$0xff] %vm309, %v308
        %v346 = vld [vmem:[#allocation2] sm:$0xff]
        %v347 = vld [vmem:[#allocation2 + $0x10] sm:$0xff]
        %v348 = vld [vmem:[#allocation2 + $0x20] sm:$0xff]
        %v349 = vld [vmem:[#allocation2 + $0x30] sm:$0xff]
        %v350 = vld [vmem:[#allocation2 + $0x40] sm:$0xff]
        %v351 = vld [vmem:[#allocation2 + $0x50] sm:$0xff]
        %v352 = vld [vmem:[#allocation2 + $0x60] sm:$0xff]
        %v353 = vld [vmem:[#allocation2 + $0x70] sm:$0xff]
        %v354 = vld [vmem:[#allocation2 + $0x80] sm:$0xff]
        %v355 = vld [vmem:[#allocation2 + $0x90] sm:$0xff]
        %v356 = vpack.c.bf16 %v347, %v346
        %v357 = vpack.c.bf16 %v349, %v348
        %v358 = vpack.c.bf16 %v351, %v350
        %v359 = vpack.c.bf16 %v353, %v352
        %v360 = vpack.c.bf16 %v355, %v354
        %v361 = vld [vmem:[%s1] sm:$0x3]
        %s362 = scalar_lea.vmem %s1, 6
        %v363 = vld [vmem:[%s362] sm:$0x3]
        %vm369 = vcmask 1043456
        %v370 = vrot.slane %v356, 4
        %v371 = vrot.slane %v357, 4
        %v372 = vsel %vm369, %v370, %v371
        %v373 = vrot.slane %v358, 4
        %v374 = vsel %vm369, %v371, %v373
        %v375 = vrot.slane %v359, 4
        %v376 = vsel %vm369, %v373, %v375
        %v377 = vrot.slane %v360, 4
        %v378 = vsel %vm369, %v375, %v377
        %v380 = vsel %vm309, %v372, 0
        %v383 = vsel %vm309, %v374, 0
        %v386 = vsel %vm309, %v376, 0
        %v389 = vsel %vm309, %v378, 0
        %vm391 = vcmask 1041408
        %v393 = vsel %vm391, %v363, 0
        %395 = vmatprep.subr.bf16.mxu0 0
        %396 = vmatpush1.bf16.msra.mxu0 0
        %397 = vmatprep.subr.bf16.mxu0 0
        %398 = vmatpush1.bf16.msra.mxu0 0
        %399 = vmatprep.subr.bf16.mxu0 0
        %400 = vmatpush1.bf16.msra.mxu0 0
        %401 = vmatprep.subr.bf16.mxu0 0
        %402 = vmatpush1.bf16.msra.mxu0 0
        %403 = vmatprep.subr.bf16.mxu0 0
        %404 = vmatpush1.bf16.msra.mxu0 0
        %405 = vmatprep.subr.bf16.mxu0 0
        %406 = vmatpush1.bf16.msra.mxu0 0
        %407 = vmatprep.subr.bf16.mxu0 0
        %408 = vmatpush1.bf16.msra.mxu0 0
        %409 = vmatprep.subr.bf16.mxu0 0
        %410 = vmatpush1.bf16.msra.mxu0 %v393
        %411 = vmatprep.subr.bf16.mxu0 0
        %412 = vmatpush2.bf16.msra.mxu0 0
        %413 = vmatprep.subr.bf16.mxu0 0
        %414 = vmatpush2.bf16.msra.mxu0 0
        %415 = vmatprep.subr.bf16.mxu0 0
        %416 = vmatpush2.bf16.msra.mxu0 0
        %417 = vmatprep.subr.bf16.mxu0 0
        %418 = vmatpush2.bf16.msra.mxu0 0
        %419 = vmatprep.subr.bf16.mxu0 0
        %420 = vmatpush2.bf16.msra.mxu0 0
        %421 = vmatprep.subr.bf16.mxu0 0
        %422 = vmatpush2.bf16.msra.mxu0 0
        %423 = vmatprep.subr.bf16.mxu0 0
        %424 = vmatpush2.bf16.msra.mxu0 0
        %425 = vmatprep.subr.bf16.mxu0 0
        %426 = vmatpush2.bf16.msra.mxu0 0
        %427 = vmatprep.mubr.bf16.mxu0 0
        %428 = vmatmul.mubr.bf16.gmra.mxu0 %v380
        %v429 = vpop.f32.mrf.mxu0
        %v430 = vadd.f32 0.0, %v429
        %v431 = vpop.f32.mrf.mxu0
        %v432 = vpop.f32.mrf.mxu0
        %v433 = vadd.f32 0.0, %v432
        %v434 = vpop.f32.mrf.mxu0
        %435 = vmatprep.mubr.bf16.mxu0 0
        %436 = vmatmul.mubr.bf16.gmra.mxu0 %v383
        %v437 = vpop.f32.mrf.mxu0
        %v438 = vadd.f32 0.0, %v437
        %v439 = vpop.f32.mrf.mxu0
        %v440 = vpop.f32.mrf.mxu0
        %v441 = vadd.f32 0.0, %v440
        %v442 = vpop.f32.mrf.mxu0
        %443 = vmatprep.mubr.bf16.mxu0 0
        %444 = vmatmul.mubr.bf16.gmra.mxu0 %v386
        %v445 = vpop.f32.mrf.mxu0
        %v446 = vadd.f32 0.0, %v445
        %v447 = vpop.f32.mrf.mxu0
        %v448 = vpop.f32.mrf.mxu0
        %v449 = vadd.f32 0.0, %v448
        %v450 = vpop.f32.mrf.mxu0
        %451 = vmatprep.mubr.bf16.mxu0 0
        %452 = vmatmul.mubr.bf16.gmra.mxu0 %v389
        %v453 = vpop.f32.mrf.mxu0
        %v454 = vadd.f32 0.0, %v453
        %v455 = vpop.f32.mrf.mxu0
        %v456 = vpop.f32.mrf.mxu0
        %v457 = vadd.f32 0.0, %v456
        %v458 = vpop.f32.mrf.mxu0
        %459 = vdwg.mxu0
        %v461 = vsel %vm309, %v356, 0
        %v464 = vsel %vm309, %v357, 0
        %v467 = vsel %vm309, %v358, 0
        %v470 = vsel %vm309, %v359, 0
        %v473 = vsel %vm391, %v361, 0
        %475 = vmatprep.subr.bf16.mxu0 0
        %476 = vmatpush1.bf16.msra.mxu0 0
        %477 = vmatprep.subr.bf16.mxu0 0
        %478 = vmatpush1.bf16.msra.mxu0 0
        %479 = vmatprep.subr.bf16.mxu0 0
        %480 = vmatpush1.bf16.msra.mxu0 0
        %481 = vmatprep.subr.bf16.mxu0 0
        %482 = vmatpush1.bf16.msra.mxu0 0
        %483 = vmatprep.subr.bf16.mxu0 0
        %484 = vmatpush1.bf16.msra.mxu0 0
        %485 = vmatprep.subr.bf16.mxu0 0
        %486 = vmatpush1.bf16.msra.mxu0 0
        %487 = vmatprep.subr.bf16.mxu0 0
        %488 = vmatpush1.bf16.msra.mxu0 0
        %489 = vmatprep.subr.bf16.mxu0 0
        %490 = vmatpush1.bf16.msra.mxu0 %v473
        %491 = vmatprep.subr.bf16.mxu0 0
        %492 = vmatpush2.bf16.msra.mxu0 0
        %493 = vmatprep.subr.bf16.mxu0 0
        %494 = vmatpush2.bf16.msra.mxu0 0
        %495 = vmatprep.subr.bf16.mxu0 0
        %496 = vmatpush2.bf16.msra.mxu0 0
        %497 = vmatprep.subr.bf16.mxu0 0
        %498 = vmatpush2.bf16.msra.mxu0 0
        %499 = vmatprep.subr.bf16.mxu0 0
        %500 = vmatpush2.bf16.msra.mxu0 0
        %501 = vmatprep.subr.bf16.mxu0 0
        %502 = vmatpush2.bf16.msra.mxu0 0
        %503 = vmatprep.subr.bf16.mxu0 0
        %504 = vmatpush2.bf16.msra.mxu0 0
        %505 = vmatprep.subr.bf16.mxu0 0
        %506 = vmatpush2.bf16.msra.mxu0 0
        %507 = vmatprep.mubr.bf16.mxu0 0
        %508 = vmatmul.mubr.bf16.gmra.mxu0 %v461
        %v509 = vpop.f32.mrf.mxu0
        %v510 = vadd.f32 %v430, %v509
        %v511 = vpop.f32.mrf.mxu0
        %v512 = vpop.f32.mrf.mxu0
        %v513 = vadd.f32 %v433, %v512
        %v514 = vpop.f32.mrf.mxu0
        %515 = vmatprep.mubr.bf16.mxu0 0
        %516 = vmatmul.mubr.bf16.gmra.mxu0 %v464
        %v517 = vpop.f32.mrf.mxu0
        %v518 = vadd.f32 %v438, %v517
        %v519 = vpop.f32.mrf.mxu0
        %v520 = vpop.f32.mrf.mxu0
        %v521 = vadd.f32 %v441, %v520
        %v522 = vpop.f32.mrf.mxu0
        %523 = vmatprep.mubr.bf16.mxu0 0
        %524 = vmatmul.mubr.bf16.gmra.mxu0 %v467
        %v525 = vpop.f32.mrf.mxu0
        %v526 = vadd.f32 %v446, %v525
        %v527 = vpop.f32.mrf.mxu0
        %v528 = vpop.f32.mrf.mxu0
        %v529 = vadd.f32 %v449, %v528
        %v530 = vpop.f32.mrf.mxu0
        %531 = vmatprep.mubr.bf16.mxu0 0
        %532 = vmatmul.mubr.bf16.gmra.mxu0 %v470
        %v533 = vpop.f32.mrf.mxu0
        %v534 = vadd.f32 %v454, %v533
        %v535 = vpop.f32.mrf.mxu0
        %v536 = vpop.f32.mrf.mxu0
        %v537 = vadd.f32 %v457, %v536
        %v538 = vpop.f32.mrf.mxu0
        %539 = vdwg.mxu0
        %s540 = scalar_lea.vmem %s1, 12
        %v541 = vld [vmem:[%s540] sm:$0x3]
        %v543 = vsel %vm309, %v360, 0
        %v546 = vsel %vm391, %v541, 0
        %548 = vmatprep.subr.bf16.mxu0 0
        %549 = vmatpush1.bf16.msra.mxu0 0
        %550 = vmatprep.subr.bf16.mxu0 0
        %551 = vmatpush1.bf16.msra.mxu0 0
        %552 = vmatprep.subr.bf16.mxu0 0
        %553 = vmatpush1.bf16.msra.mxu0 0
        %554 = vmatprep.subr.bf16.mxu0 0
        %555 = vmatpush1.bf16.msra.mxu0 0
        %556 = vmatprep.subr.bf16.mxu0 0
        %557 = vmatpush1.bf16.msra.mxu0 0
        %558 = vmatprep.subr.bf16.mxu0 0
        %559 = vmatpush1.bf16.msra.mxu0 0
        %560 = vmatprep.subr.bf16.mxu0 0
        %561 = vmatpush1.bf16.msra.mxu0 0
        %562 = vmatprep.subr.bf16.mxu0 0
        %563 = vmatpush1.bf16.msra.mxu0 %v546
        %564 = vmatprep.subr.bf16.mxu0 0
        %565 = vmatpush2.bf16.msra.mxu0 0
        %566 = vmatprep.subr.bf16.mxu0 0
        %567 = vmatpush2.bf16.msra.mxu0 0
        %568 = vmatprep.subr.bf16.mxu0 0
        %569 = vmatpush2.bf16.msra.mxu0 0
        %570 = vmatprep.subr.bf16.mxu0 0
        %571 = vmatpush2.bf16.msra.mxu0 0
        %572 = vmatprep.subr.bf16.mxu0 0
        %573 = vmatpush2.bf16.msra.mxu0 0
        %574 = vmatprep.subr.bf16.mxu0 0
        %575 = vmatpush2.bf16.msra.mxu0 0
        %576 = vmatprep.subr.bf16.mxu0 0
        %577 = vmatpush2.bf16.msra.mxu0 0
        %578 = vmatprep.subr.bf16.mxu0 0
        %579 = vmatpush2.bf16.msra.mxu0 0
        %580 = vmatprep.mubr.bf16.mxu0 0
        %581 = vmatmul.mubr.bf16.gmra.mxu0 %v464
        %v582 = vpop.f32.mrf.mxu0
        %v583 = vadd.f32 0.0, %v582
        %v584 = vpop.f32.mrf.mxu0
        %v585 = vpop.f32.mrf.mxu0
        %v586 = vadd.f32 0.0, %v585
        %v587 = vpop.f32.mrf.mxu0
        %588 = vmatprep.mubr.bf16.mxu0 0
        %589 = vmatmul.mubr.bf16.gmra.mxu0 %v467
        %v590 = vpop.f32.mrf.mxu0
        %v591 = vadd.f32 0.0, %v590
        %v592 = vpop.f32.mrf.mxu0
        %v593 = vpop.f32.mrf.mxu0
        %v594 = vadd.f32 0.0, %v593
        %v595 = vpop.f32.mrf.mxu0
        %596 = vmatprep.mubr.bf16.mxu0 0
        %597 = vmatmul.mubr.bf16.gmra.mxu0 %v470
        %v598 = vpop.f32.mrf.mxu0
        %v599 = vadd.f32 0.0, %v598
        %v600 = vpop.f32.mrf.mxu0
        %v601 = vpop.f32.mrf.mxu0
        %v602 = vadd.f32 0.0, %v601
        %v603 = vpop.f32.mrf.mxu0
        %604 = vmatprep.mubr.bf16.mxu0 0
        %605 = vmatmul.mubr.bf16.gmra.mxu0 %v543
        %v606 = vpop.f32.mrf.mxu0
        %v607 = vadd.f32 0.0, %v606
        %v608 = vpop.f32.mrf.mxu0
        %v609 = vpop.f32.mrf.mxu0
        %v610 = vadd.f32 0.0, %v609
        %v611 = vpop.f32.mrf.mxu0
        %612 = vdwg.mxu0
        %v613 = vadd.f32 %v510, %v583
        %v614 = vadd.f32 %v513, %v586
        %v615 = vadd.f32 %v518, %v591
        %v616 = vadd.f32 %v521, %v594
        %v617 = vadd.f32 %v526, %v599
        %v618 = vadd.f32 %v529, %v602
        %v619 = vadd.f32 %v534, %v607
        %v620 = vadd.f32 %v537, %v610
        %v621 = vld [vmem:[#allocation2 + $0x1] sm:$0xff]
        %v622 = vld [vmem:[#allocation2 + $0x11] sm:$0xff]
        %v623 = vld [vmem:[#allocation2 + $0x21] sm:$0xff]
        %v624 = vld [vmem:[#allocation2 + $0x31] sm:$0xff]
        %v625 = vld [vmem:[#allocation2 + $0x41] sm:$0xff]
        %v626 = vld [vmem:[#allocation2 + $0x51] sm:$0xff]
        %v627 = vld [vmem:[#allocation2 + $0x61] sm:$0xff]
        %v628 = vld [vmem:[#allocation2 + $0x71] sm:$0xff]
        %v629 = vld [vmem:[#allocation2 + $0x81] sm:$0xff]
        %v630 = vld [vmem:[#allocation2 + $0x91] sm:$0xff]
        %v631 = vpack.c.bf16 %v622, %v621
        %v632 = vpack.c.bf16 %v624, %v623
        %v633 = vpack.c.bf16 %v626, %v625
        %v634 = vpack.c.bf16 %v628, %v627
        %v635 = vpack.c.bf16 %v630, %v629
        %s636 = scalar_lea.vmem %s1, 2
        %v637 = vld [vmem:[%s636] sm:$0x3]
        %v639 = vsel %vm309, %v631, 0
        %v642 = vsel %vm309, %v632, 0
        %v645 = vsel %vm309, %v633, 0
        %v648 = vsel %vm309, %v634, 0
        %v651 = vsel %vm391, %v637, 0
        %653 = vmatprep.subr.bf16.mxu0 0
        %654 = vmatpush1.bf16.msra.mxu0 0
        %655 = vmatprep.subr.bf16.mxu0 0
        %656 = vmatpush1.bf16.msra.mxu0 0
        %657 = vmatprep.subr.bf16.mxu0 0
        %658 = vmatpush1.bf16.msra.mxu0 0
        %659 = vmatprep.subr.bf16.mxu0 0
        %660 = vmatpush1.bf16.msra.mxu0 0
        %661 = vmatprep.subr.bf16.mxu0 0
        %662 = vmatpush1.bf16.msra.mxu0 0
        %663 = vmatprep.subr.bf16.mxu0 0
        %664 = vmatpush1.bf16.msra.mxu0 0
        %665 = vmatprep.subr.bf16.mxu0 0
        %666 = vmatpush1.bf16.msra.mxu0 0
        %667 = vmatprep.subr.bf16.mxu0 0
        %668 = vmatpush1.bf16.msra.mxu0 %v651
        %669 = vmatprep.subr.bf16.mxu0 0
        %670 = vmatpush2.bf16.msra.mxu0 0
        %671 = vmatprep.subr.bf16.mxu0 0
        %672 = vmatpush2.bf16.msra.mxu0 0
        %673 = vmatprep.subr.bf16.mxu0 0
        %674 = vmatpush2.bf16.msra.mxu0 0
        %675 = vmatprep.subr.bf16.mxu0 0
        %676 = vmatpush2.bf16.msra.mxu0 0
        %677 = vmatprep.subr.bf16.mxu0 0
        %678 = vmatpush2.bf16.msra.mxu0 0
        %679 = vmatprep.subr.bf16.mxu0 0
        %680 = vmatpush2.bf16.msra.mxu0 0
        %681 = vmatprep.subr.bf16.mxu0 0
        %682 = vmatpush2.bf16.msra.mxu0 0
        %683 = vmatprep.subr.bf16.mxu0 0
        %684 = vmatpush2.bf16.msra.mxu0 0
        %685 = vmatprep.mubr.bf16.mxu0 0
        %686 = vmatmul.mubr.bf16.gmra.mxu0 %v639
        %v687 = vpop.f32.mrf.mxu0
        %v688 = vadd.f32 0.0, %v687
        %v689 = vpop.f32.mrf.mxu0
        %v690 = vpop.f32.mrf.mxu0
        %v691 = vadd.f32 0.0, %v690
        %v692 = vpop.f32.mrf.mxu0
        %693 = vmatprep.mubr.bf16.mxu0 0
        %694 = vmatmul.mubr.bf16.gmra.mxu0 %v642
        %v695 = vpop.f32.mrf.mxu0
        %v696 = vadd.f32 0.0, %v695
        %v697 = vpop.f32.mrf.mxu0
        %v698 = vpop.f32.mrf.mxu0
        %v699 = vadd.f32 0.0, %v698
        %v700 = vpop.f32.mrf.mxu0
        %701 = vmatprep.mubr.bf16.mxu0 0
        %702 = vmatmul.mubr.bf16.gmra.mxu0 %v645
        %v703 = vpop.f32.mrf.mxu0
        %v704 = vadd.f32 0.0, %v703
        %v705 = vpop.f32.mrf.mxu0
        %v706 = vpop.f32.mrf.mxu0
        %v707 = vadd.f32 0.0, %v706
        %v708 = vpop.f32.mrf.mxu0
        %709 = vmatprep.mubr.bf16.mxu0 0
        %710 = vmatmul.mubr.bf16.gmra.mxu0 %v648
        %v711 = vpop.f32.mrf.mxu0
        %v712 = vadd.f32 0.0, %v711
        %v713 = vpop.f32.mrf.mxu0
        %v714 = vpop.f32.mrf.mxu0
        %v715 = vadd.f32 0.0, %v714
        %v716 = vpop.f32.mrf.mxu0
        %717 = vdwg.mxu0
        %v718 = vadd.f32 %v613, %v688
        %v719 = vadd.f32 %v614, %v691
        %v720 = vadd.f32 %v615, %v696
        %v721 = vadd.f32 %v616, %v699
        %v722 = vadd.f32 %v617, %v704
        %v723 = vadd.f32 %v618, %v707
        %v724 = vadd.f32 %v619, %v712
        %v725 = vadd.f32 %v620, %v715
        %s726 = scalar_lea.vmem %s1, 8
        %v727 = vld [vmem:[%s726] sm:$0x3]
        %v733 = vrot.slane %v631, 4
        %v734 = vrot.slane %v632, 4
        %v735 = vsel %vm369, %v733, %v734
        %v736 = vrot.slane %v633, 4
        %v737 = vsel %vm369, %v734, %v736
        %v738 = vrot.slane %v634, 4
        %v739 = vsel %vm369, %v736, %v738
        %v740 = vrot.slane %v635, 4
        %v741 = vsel %vm369, %v738, %v740
        %v743 = vsel %vm309, %v735, 0
        %v746 = vsel %vm309, %v737, 0
        %v749 = vsel %vm309, %v739, 0
        %v752 = vsel %vm309, %v741, 0
        %v755 = vsel %vm391, %v727, 0
        %757 = vmatprep.subr.bf16.mxu0 0
        %758 = vmatpush1.bf16.msra.mxu0 0
        %759 = vmatprep.subr.bf16.mxu0 0
        %760 = vmatpush1.bf16.msra.mxu0 0
        %761 = vmatprep.subr.bf16.mxu0 0
        %762 = vmatpush1.bf16.msra.mxu0 0
        %763 = vmatprep.subr.bf16.mxu0 0
        %764 = vmatpush1.bf16.msra.mxu0 0
        %765 = vmatprep.subr.bf16.mxu0 0
        %766 = vmatpush1.bf16.msra.mxu0 0
        %767 = vmatprep.subr.bf16.mxu0 0
        %768 = vmatpush1.bf16.msra.mxu0 0
        %769 = vmatprep.subr.bf16.mxu0 0
        %770 = vmatpush1.bf16.msra.mxu0 0
        %771 = vmatprep.subr.bf16.mxu0 0
        %772 = vmatpush1.bf16.msra.mxu0 %v755
        %773 = vmatprep.subr.bf16.mxu0 0
        %774 = vmatpush2.bf16.msra.mxu0 0
        %775 = vmatprep.subr.bf16.mxu0 0
        %776 = vmatpush2.bf16.msra.mxu0 0
        %777 = vmatprep.subr.bf16.mxu0 0
        %778 = vmatpush2.bf16.msra.mxu0 0
        %779 = vmatprep.subr.bf16.mxu0 0
        %780 = vmatpush2.bf16.msra.mxu0 0
        %781 = vmatprep.subr.bf16.mxu0 0
        %782 = vmatpush2.bf16.msra.mxu0 0
        %783 = vmatprep.subr.bf16.mxu0 0
        %784 = vmatpush2.bf16.msra.mxu0 0
        %785 = vmatprep.subr.bf16.mxu0 0
        %786 = vmatpush2.bf16.msra.mxu0 0
        %787 = vmatprep.subr.bf16.mxu0 0
        %788 = vmatpush2.bf16.msra.mxu0 0
        %789 = vmatprep.mubr.bf16.mxu0 0
        %790 = vmatmul.mubr.bf16.gmra.mxu0 %v743
        %v791 = vpop.f32.mrf.mxu0
        %v792 = vadd.f32 0.0, %v791
        %v793 = vpop.f32.mrf.mxu0
        %v794 = vpop.f32.mrf.mxu0
        %v795 = vadd.f32 0.0, %v794
        %v796 = vpop.f32.mrf.mxu0
        %797 = vmatprep.mubr.bf16.mxu0 0
        %798 = vmatmul.mubr.bf16.gmra.mxu0 %v746
        %v799 = vpop.f32.mrf.mxu0
        %v800 = vadd.f32 0.0, %v799
        %v801 = vpop.f32.mrf.mxu0
        %v802 = vpop.f32.mrf.mxu0
        %v803 = vadd.f32 0.0, %v802
        %v804 = vpop.f32.mrf.mxu0
        %805 = vmatprep.mubr.bf16.mxu0 0
        %806 = vmatmul.mubr.bf16.gmra.mxu0 %v749
        %v807 = vpop.f32.mrf.mxu0
        %v808 = vadd.f32 0.0, %v807
        %v809 = vpop.f32.mrf.mxu0
        %v810 = vpop.f32.mrf.mxu0
        %v811 = vadd.f32 0.0, %v810
        %v812 = vpop.f32.mrf.mxu0
        %813 = vmatprep.mubr.bf16.mxu0 0
        %814 = vmatmul.mubr.bf16.gmra.mxu0 %v752
        %v815 = vpop.f32.mrf.mxu0
        %v816 = vadd.f32 0.0, %v815
        %v817 = vpop.f32.mrf.mxu0
        %v818 = vpop.f32.mrf.mxu0
        %v819 = vadd.f32 0.0, %v818
        %v820 = vpop.f32.mrf.mxu0
        %821 = vdwg.mxu0
        %v822 = vadd.f32 %v718, %v792
        %v823 = vadd.f32 %v719, %v795
        %v824 = vadd.f32 %v720, %v800
        %v825 = vadd.f32 %v721, %v803
        %v826 = vadd.f32 %v722, %v808
        %v827 = vadd.f32 %v723, %v811
        %v828 = vadd.f32 %v724, %v816
        %v829 = vadd.f32 %v725, %v819
        %s830 = scalar_lea.vmem %s1, 14
        %v831 = vld [vmem:[%s830] sm:$0x3]
        %v833 = vsel %vm309, %v635, 0
        %v836 = vsel %vm391, %v831, 0
        %838 = vmatprep.subr.bf16.mxu0 0
        %839 = vmatpush1.bf16.msra.mxu0 0
        %840 = vmatprep.subr.bf16.mxu0 0
        %841 = vmatpush1.bf16.msra.mxu0 0
        %842 = vmatprep.subr.bf16.mxu0 0
        %843 = vmatpush1.bf16.msra.mxu0 0
        %844 = vmatprep.subr.bf16.mxu0 0
        %845 = vmatpush1.bf16.msra.mxu0 0
        %846 = vmatprep.subr.bf16.mxu0 0
        %847 = vmatpush1.bf16.msra.mxu0 0
        %848 = vmatprep.subr.bf16.mxu0 0
        %849 = vmatpush1.bf16.msra.mxu0 0
        %850 = vmatprep.subr.bf16.mxu0 0
        %851 = vmatpush1.bf16.msra.mxu0 0
        %852 = vmatprep.subr.bf16.mxu0 0
        %853 = vmatpush1.bf16.msra.mxu0 %v836
        %854 = vmatprep.subr.bf16.mxu0 0
        %855 = vmatpush2.bf16.msra.mxu0 0
        %856 = vmatprep.subr.bf16.mxu0 0
        %857 = vmatpush2.bf16.msra.mxu0 0
        %858 = vmatprep.subr.bf16.mxu0 0
        %859 = vmatpush2.bf16.msra.mxu0 0
        %860 = vmatprep.subr.bf16.mxu0 0
        %861 = vmatpush2.bf16.msra.mxu0 0
        %862 = vmatprep.subr.bf16.mxu0 0
        %863 = vmatpush2.bf16.msra.mxu0 0
        %864 = vmatprep.subr.bf16.mxu0 0
        %865 = vmatpush2.bf16.msra.mxu0 0
        %866 = vmatprep.subr.bf16.mxu0 0
        %867 = vmatpush2.bf16.msra.mxu0 0
        %868 = vmatprep.subr.bf16.mxu0 0
        %869 = vmatpush2.bf16.msra.mxu0 0
        %870 = vmatprep.mubr.bf16.mxu0 0
        %871 = vmatmul.mubr.bf16.gmra.mxu0 %v642
        %v872 = vpop.f32.mrf.mxu0
        %v873 = vadd.f32 0.0, %v872
        %v874 = vpop.f32.mrf.mxu0
        %v875 = vpop.f32.mrf.mxu0
        %v876 = vadd.f32 0.0, %v875
        %v877 = vpop.f32.mrf.mxu0
        %878 = vmatprep.mubr.bf16.mxu0 0
        %879 = vmatmul.mubr.bf16.gmra.mxu0 %v645
        %v880 = vpop.f32.mrf.mxu0
        %v881 = vadd.f32 0.0, %v880
        %v882 = vpop.f32.mrf.mxu0
        %v883 = vpop.f32.mrf.mxu0
        %v884 = vadd.f32 0.0, %v883
        %v885 = vpop.f32.mrf.mxu0
        %886 = vmatprep.mubr.bf16.mxu0 0
        %887 = vmatmul.mubr.bf16.gmra.mxu0 %v648
        %v888 = vpop.f32.mrf.mxu0
        %v889 = vadd.f32 0.0, %v888
        %v890 = vpop.f32.mrf.mxu0
        %v891 = vpop.f32.mrf.mxu0
        %v892 = vadd.f32 0.0, %v891
        %v893 = vpop.f32.mrf.mxu0
        %894 = vmatprep.mubr.bf16.mxu0 0
        %895 = vmatmul.mubr.bf16.gmra.mxu0 %v833
        %v896 = vpop.f32.mrf.mxu0
        %v897 = vadd.f32 0.0, %v896
        %v898 = vpop.f32.mrf.mxu0
        %v899 = vpop.f32.mrf.mxu0
        %v900 = vadd.f32 0.0, %v899
        %v901 = vpop.f32.mrf.mxu0
        %902 = vdwg.mxu0
        %v903 = vadd.f32 %v822, %v873
        %v904 = vadd.f32 %v823, %v876
        %v905 = vadd.f32 %v824, %v881
        %v906 = vadd.f32 %v825, %v884
        %v907 = vadd.f32 %v826, %v889
        %v908 = vadd.f32 %v827, %v892
        %v909 = vadd.f32 %v828, %v897
        %v910 = vadd.f32 %v829, %v900
        %v911 = vld [vmem:[#allocation2 + $0x2] sm:$0xff]
        %v912 = vld [vmem:[#allocation2 + $0x12] sm:$0xff]
        %v913 = vld [vmem:[#allocation2 + $0x22] sm:$0xff]
        %v914 = vld [vmem:[#allocation2 + $0x32] sm:$0xff]
        %v915 = vld [vmem:[#allocation2 + $0x42] sm:$0xff]
        %v916 = vld [vmem:[#allocation2 + $0x52] sm:$0xff]
        %v917 = vld [vmem:[#allocation2 + $0x62] sm:$0xff]
        %v918 = vld [vmem:[#allocation2 + $0x72] sm:$0xff]
        %v919 = vld [vmem:[#allocation2 + $0x82] sm:$0xff]
        %v920 = vld [vmem:[#allocation2 + $0x92] sm:$0xff]
        %v921 = vpack.c.bf16 %v912, %v911
        %v922 = vpack.c.bf16 %v914, %v913
        %v923 = vpack.c.bf16 %v916, %v915
        %v924 = vpack.c.bf16 %v918, %v917
        %v925 = vpack.c.bf16 %v920, %v919
        %s926 = scalar_lea.vmem %s1, 4
        %v927 = vld [vmem:[%s926] sm:$0x3]
        %v929 = vsel %vm309, %v921, 0
        %v932 = vsel %vm309, %v922, 0
        %v935 = vsel %vm309, %v923, 0
        %v938 = vsel %vm309, %v924, 0
        %v941 = vsel %vm391, %v927, 0
        %943 = vmatprep.subr.bf16.mxu0 0
        %944 = vmatpush1.bf16.msra.mxu0 0
        %945 = vmatprep.subr.bf16.mxu0 0
        %946 = vmatpush1.bf16.msra.mxu0 0
        %947 = vmatprep.subr.bf16.mxu0 0
        %948 = vmatpush1.bf16.msra.mxu0 0
        %949 = vmatprep.subr.bf16.mxu0 0
        %950 = vmatpush1.bf16.msra.mxu0 0
        %951 = vmatprep.subr.bf16.mxu0 0
        %952 = vmatpush1.bf16.msra.mxu0 0
        %953 = vmatprep.subr.bf16.mxu0 0
        %954 = vmatpush1.bf16.msra.mxu0 0
        %955 = vmatprep.subr.bf16.mxu0 0
        %956 = vmatpush1.bf16.msra.mxu0 0
        %957 = vmatprep.subr.bf16.mxu0 0
        %958 = vmatpush1.bf16.msra.mxu0 %v941
        %959 = vmatprep.subr.bf16.mxu0 0
        %960 = vmatpush2.bf16.msra.mxu0 0
        %961 = vmatprep.subr.bf16.mxu0 0
        %962 = vmatpush2.bf16.msra.mxu0 0
        %963 = vmatprep.subr.bf16.mxu0 0
        %964 = vmatpush2.bf16.msra.mxu0 0
        %965 = vmatprep.subr.bf16.mxu0 0
        %966 = vmatpush2.bf16.msra.mxu0 0
        %967 = vmatprep.subr.bf16.mxu0 0
        %968 = vmatpush2.bf16.msra.mxu0 0
        %969 = vmatprep.subr.bf16.mxu0 0
        %970 = vmatpush2.bf16.msra.mxu0 0
        %971 = vmatprep.subr.bf16.mxu0 0
        %972 = vmatpush2.bf16.msra.mxu0 0
        %973 = vmatprep.subr.bf16.mxu0 0
        %974 = vmatpush2.bf16.msra.mxu0 0
        %975 = vmatprep.mubr.bf16.mxu0 0
        %976 = vmatmul.mubr.bf16.gmra.mxu0 %v929
        %v977 = vpop.f32.mrf.mxu0
        %v978 = vadd.f32 0.0, %v977
        %v979 = vpop.f32.mrf.mxu0
        %v980 = vpop.f32.mrf.mxu0
        %v981 = vadd.f32 0.0, %v980
        %v982 = vpop.f32.mrf.mxu0
        %983 = vmatprep.mubr.bf16.mxu0 0
        %984 = vmatmul.mubr.bf16.gmra.mxu0 %v932
        %v985 = vpop.f32.mrf.mxu0
        %v986 = vadd.f32 0.0, %v985
        %v987 = vpop.f32.mrf.mxu0
        %v988 = vpop.f32.mrf.mxu0
        %v989 = vadd.f32 0.0, %v988
        %v990 = vpop.f32.mrf.mxu0
        %991 = vmatprep.mubr.bf16.mxu0 0
        %992 = vmatmul.mubr.bf16.gmra.mxu0 %v935
        %v993 = vpop.f32.mrf.mxu0
        %v994 = vadd.f32 0.0, %v993
        %v995 = vpop.f32.mrf.mxu0
        %v996 = vpop.f32.mrf.mxu0
        %v997 = vadd.f32 0.0, %v996
        %v998 = vpop.f32.mrf.mxu0
        %999 = vmatprep.mubr.bf16.mxu0 0
        %1000 = vmatmul.mubr.bf16.gmra.mxu0 %v938
        %v1001 = vpop.f32.mrf.mxu0
        %v1002 = vadd.f32 0.0, %v1001
        %v1003 = vpop.f32.mrf.mxu0
        %v1004 = vpop.f32.mrf.mxu0
        %v1005 = vadd.f32 0.0, %v1004
        %v1006 = vpop.f32.mrf.mxu0
        %1007 = vdwg.mxu0
        %v1008 = vadd.f32 %v903, %v978
        %v1009 = vadd.f32 %v904, %v981
        %v1010 = vadd.f32 %v905, %v986
        %v1011 = vadd.f32 %v906, %v989
        %v1012 = vadd.f32 %v907, %v994
        %v1013 = vadd.f32 %v908, %v997
        %v1014 = vadd.f32 %v909, %v1002
        %v1015 = vadd.f32 %v910, %v1005
        %s1016 = scalar_lea.vmem %s1, 10
        %v1017 = vld [vmem:[%s1016] sm:$0x3]
        %v1023 = vrot.slane %v921, 4
        %v1024 = vrot.slane %v922, 4
        %v1025 = vsel %vm369, %v1023, %v1024
        %v1026 = vrot.slane %v923, 4
        %v1027 = vsel %vm369, %v1024, %v1026
        %v1028 = vrot.slane %v924, 4
        %v1029 = vsel %vm369, %v1026, %v1028
        %v1030 = vrot.slane %v925, 4
        %v1031 = vsel %vm369, %v1028, %v1030
        %v1033 = vsel %vm309, %v1025, 0
        %v1036 = vsel %vm309, %v1027, 0
        %v1039 = vsel %vm309, %v1029, 0
        %v1042 = vsel %vm309, %v1031, 0
        %v1045 = vsel %vm391, %v1017, 0
        %1047 = vmatprep.subr.bf16.mxu0 0
        %1048 = vmatpush1.bf16.msra.mxu0 0
        %1049 = vmatprep.subr.bf16.mxu0 0
        %1050 = vmatpush1.bf16.msra.mxu0 0
        %1051 = vmatprep.subr.bf16.mxu0 0
        %1052 = vmatpush1.bf16.msra.mxu0 0
        %1053 = vmatprep.subr.bf16.mxu0 0
        %1054 = vmatpush1.bf16.msra.mxu0 0
        %1055 = vmatprep.subr.bf16.mxu0 0
        %1056 = vmatpush1.bf16.msra.mxu0 0
        %1057 = vmatprep.subr.bf16.mxu0 0
        %1058 = vmatpush1.bf16.msra.mxu0 0
        %1059 = vmatprep.subr.bf16.mxu0 0
        %1060 = vmatpush1.bf16.msra.mxu0 0
        %1061 = vmatprep.subr.bf16.mxu0 0
        %1062 = vmatpush1.bf16.msra.mxu0 %v1045
        %1063 = vmatprep.subr.bf16.mxu0 0
        %1064 = vmatpush2.bf16.msra.mxu0 0
        %1065 = vmatprep.subr.bf16.mxu0 0
        %1066 = vmatpush2.bf16.msra.mxu0 0
        %1067 = vmatprep.subr.bf16.mxu0 0
        %1068 = vmatpush2.bf16.msra.mxu0 0
        %1069 = vmatprep.subr.bf16.mxu0 0
        %1070 = vmatpush2.bf16.msra.mxu0 0
        %1071 = vmatprep.subr.bf16.mxu0 0
        %1072 = vmatpush2.bf16.msra.mxu0 0
        %1073 = vmatprep.subr.bf16.mxu0 0
        %1074 = vmatpush2.bf16.msra.mxu0 0
        %1075 = vmatprep.subr.bf16.mxu0 0
        %1076 = vmatpush2.bf16.msra.mxu0 0
        %1077 = vmatprep.subr.bf16.mxu0 0
        %1078 = vmatpush2.bf16.msra.mxu0 0
        %1079 = vmatprep.mubr.bf16.mxu0 0
        %1080 = vmatmul.mubr.bf16.gmra.mxu0 %v1033
        %v1081 = vpop.f32.mrf.mxu0
        %v1082 = vadd.f32 0.0, %v1081
        %v1083 = vpop.f32.mrf.mxu0
        %v1084 = vpop.f32.mrf.mxu0
        %v1085 = vadd.f32 0.0, %v1084
        %v1086 = vpop.f32.mrf.mxu0
        %1087 = vmatprep.mubr.bf16.mxu0 0
        %1088 = vmatmul.mubr.bf16.gmra.mxu0 %v1036
        %v1089 = vpop.f32.mrf.mxu0
        %v1090 = vadd.f32 0.0, %v1089
        %v1091 = vpop.f32.mrf.mxu0
        %v1092 = vpop.f32.mrf.mxu0
        %v1093 = vadd.f32 0.0, %v1092
        %v1094 = vpop.f32.mrf.mxu0
        %1095 = vmatprep.mubr.bf16.mxu0 0
        %1096 = vmatmul.mubr.bf16.gmra.mxu0 %v1039
        %v1097 = vpop.f32.mrf.mxu0
        %v1098 = vadd.f32 0.0, %v1097
        %v1099 = vpop.f32.mrf.mxu0
        %v1100 = vpop.f32.mrf.mxu0
        %v1101 = vadd.f32 0.0, %v1100
        %v1102 = vpop.f32.mrf.mxu0
        %1103 = vmatprep.mubr.bf16.mxu0 0
        %1104 = vmatmul.mubr.bf16.gmra.mxu0 %v1042
        %v1105 = vpop.f32.mrf.mxu0
        %v1106 = vadd.f32 0.0, %v1105
        %v1107 = vpop.f32.mrf.mxu0
        %v1108 = vpop.f32.mrf.mxu0
        %v1109 = vadd.f32 0.0, %v1108
        %v1110 = vpop.f32.mrf.mxu0
        %1111 = vdwg.mxu0
        %v1112 = vadd.f32 %v1008, %v1082
        %v1113 = vadd.f32 %v1009, %v1085
        %v1114 = vadd.f32 %v1010, %v1090
        %v1115 = vadd.f32 %v1011, %v1093
        %v1116 = vadd.f32 %v1012, %v1098
        %v1117 = vadd.f32 %v1013, %v1101
        %v1118 = vadd.f32 %v1014, %v1106
        %v1119 = vadd.f32 %v1015, %v1109
        %s1120 = scalar_lea.vmem %s1, 16
        %v1121 = vld [vmem:[%s1120] sm:$0x3]
        %v1123 = vsel %vm309, %v925, 0
        %v1126 = vsel %vm391, %v1121, 0
        %1128 = vmatprep.subr.bf16.mxu0 0
        %1129 = vmatpush1.bf16.msra.mxu0 0
        %1130 = vmatprep.subr.bf16.mxu0 0
        %1131 = vmatpush1.bf16.msra.mxu0 0
        %1132 = vmatprep.subr.bf16.mxu0 0
        %1133 = vmatpush1.bf16.msra.mxu0 0
        %1134 = vmatprep.subr.bf16.mxu0 0
        %1135 = vmatpush1.bf16.msra.mxu0 0
        %1136 = vmatprep.subr.bf16.mxu0 0
        %1137 = vmatpush1.bf16.msra.mxu0 0
        %1138 = vmatprep.subr.bf16.mxu0 0
        %1139 = vmatpush1.bf16.msra.mxu0 0
        %1140 = vmatprep.subr.bf16.mxu0 0
        %1141 = vmatpush1.bf16.msra.mxu0 0
        %1142 = vmatprep.subr.bf16.mxu0 0
        %1143 = vmatpush1.bf16.msra.mxu0 %v1126
        %1144 = vmatprep.subr.bf16.mxu0 0
        %1145 = vmatpush2.bf16.msra.mxu0 0
        %1146 = vmatprep.subr.bf16.mxu0 0
        %1147 = vmatpush2.bf16.msra.mxu0 0
        %1148 = vmatprep.subr.bf16.mxu0 0
        %1149 = vmatpush2.bf16.msra.mxu0 0
        %1150 = vmatprep.subr.bf16.mxu0 0
        %1151 = vmatpush2.bf16.msra.mxu0 0
        %1152 = vmatprep.subr.bf16.mxu0 0
        %1153 = vmatpush2.bf16.msra.mxu0 0
        %1154 = vmatprep.subr.bf16.mxu0 0
        %1155 = vmatpush2.bf16.msra.mxu0 0
        %1156 = vmatprep.subr.bf16.mxu0 0
        %1157 = vmatpush2.bf16.msra.mxu0 0
        %1158 = vmatprep.subr.bf16.mxu0 0
        %1159 = vmatpush2.bf16.msra.mxu0 0
        %1160 = vmatprep.mubr.bf16.mxu0 0
        %1161 = vmatmul.mubr.bf16.gmra.mxu0 %v932
        %v1162 = vpop.f32.mrf.mxu0
        %v1163 = vadd.f32 0.0, %v1162
        %v1164 = vpop.f32.mrf.mxu0
        %v1165 = vpop.f32.mrf.mxu0
        %v1166 = vadd.f32 0.0, %v1165
        %v1167 = vpop.f32.mrf.mxu0
        %1168 = vmatprep.mubr.bf16.mxu0 0
        %1169 = vmatmul.mubr.bf16.gmra.mxu0 %v935
        %v1170 = vpop.f32.mrf.mxu0
        %v1171 = vadd.f32 0.0, %v1170
        %v1172 = vpop.f32.mrf.mxu0
        %v1173 = vpop.f32.mrf.mxu0
        %v1174 = vadd.f32 0.0, %v1173
        %v1175 = vpop.f32.mrf.mxu0
        %1176 = vmatprep.mubr.bf16.mxu0 0
        %1177 = vmatmul.mubr.bf16.gmra.mxu0 %v938
        %v1178 = vpop.f32.mrf.mxu0
        %v1179 = vadd.f32 0.0, %v1178
        %v1180 = vpop.f32.mrf.mxu0
        %v1181 = vpop.f32.mrf.mxu0
        %v1182 = vadd.f32 0.0, %v1181
        %v1183 = vpop.f32.mrf.mxu0
        %1184 = vmatprep.mubr.bf16.mxu0 0
        %1185 = vmatmul.mubr.bf16.gmra.mxu0 %v1123
        %v1186 = vpop.f32.mrf.mxu0
        %v1187 = vadd.f32 0.0, %v1186
        %v1188 = vpop.f32.mrf.mxu0
        %v1189 = vpop.f32.mrf.mxu0
        %v1190 = vadd.f32 0.0, %v1189
        %v1191 = vpop.f32.mrf.mxu0
        %1192 = vdwg.mxu0
        %v1193 = vadd.f32 %v1112, %v1163
        %v1194 = vadd.f32 %v1113, %v1166
        %v1195 = vadd.f32 %v1114, %v1171
        %v1196 = vadd.f32 %v1115, %v1174
        %v1197 = vadd.f32 %v1116, %v1179
        %v1198 = vadd.f32 %v1117, %v1182
        %v1199 = vadd.f32 %v1118, %v1187
        %v1200 = vadd.f32 %v1119, %v1190
        %v1201 = vld [vmem:[%s2] sm:$0x1]
        %v1203 = vlaneseq
        %v1204 = vshrl.u32 %v1203, 7
        %v1205 = vsub.s32 0, %v1204
        %v1206 = vrot.slane %v1201, %v1205
        %v1208 = vadd.f32 %v1193, %v1206
        %v1209 = vadd.f32 %v1194, %v1206
        %v1210 = vadd.f32 %v1195, %v1206
        %v1211 = vadd.f32 %v1196, %v1206
        %v1212 = vadd.f32 %v1197, %v1206
        %v1213 = vadd.f32 %v1198, %v1206
        %v1214 = vadd.f32 %v1199, %v1206
        %v1215 = vadd.f32 %v1200, %v1206
        %v1216 = vmax.f32 %v1208, 0.0
        %v1217 = vmax.f32 %v1209, 0.0
        %v1218 = vmax.f32 %v1210, 0.0
        %v1219 = vmax.f32 %v1211, 0.0
        %v1220 = vmax.f32 %v1212, 0.0
        %v1221 = vmax.f32 %v1213, 0.0
        %v1222 = vmax.f32 %v1214, 0.0
        %v1223 = vmax.f32 %v1215, 0.0
        %vm1224 = vcmask 64512
        %1225 = vst.msk [vmem:[#allocation3] sm:$0xff] %vm1224, 0.0
        %vm1226 = vcmask 58368
        %1227 = vst.msk [vmem:[#allocation3 + $0x8] sm:$0x3] %vm1226, 0.0
        %s1228 = scalar_lea.vmem [#allocation3], 144
        %1229 = vst.msk [vmem:[%s1228] sm:$0xff] %vm1224, 0.0
        %1230 = vst.msk [vmem:[%s1228 + $0x8] sm:$0x3] %vm1226, 0.0
        %vm1231 = vcmask 57344
        %1232 = vst.msk [vmem:[#allocation3] sm:$0x1] %vm1231, 0.0
        %1233 = vst.msk [vmem:[#allocation3 + $0x10] sm:$0x1] %vm1231, 0.0
        %1234 = vst.msk [vmem:[#allocation3 + $0x20] sm:$0x1] %vm1231, 0.0
        %1235 = vst.msk [vmem:[#allocation3 + $0x30] sm:$0x1] %vm1231, 0.0
        %1236 = vst.msk [vmem:[#allocation3 + $0x40] sm:$0x1] %vm1231, 0.0
        %1237 = vst.msk [vmem:[#allocation3 + $0x50] sm:$0x1] %vm1231, 0.0
        %1238 = vst.msk [vmem:[#allocation3 + $0x60] sm:$0x1] %vm1231, 0.0
        %1239 = vst.msk [vmem:[#allocation3 + $0x70] sm:$0x1] %vm1231, 0.0
        %1240 = vst.msk [vmem:[#allocation3 + $0x80] sm:$0x1] %vm1231, 0.0
        %1241 = vst.msk [vmem:[#allocation3 + $0x90] sm:$0x1] %vm1231, 0.0
        %1242 = vst.msk [vmem:[#allocation3 + $0x9] sm:$0x1] %vm1231, 0.0
        %1243 = vst.msk [vmem:[#allocation3 + $0x19] sm:$0x1] %vm1231, 0.0
        %1244 = vst.msk [vmem:[#allocation3 + $0x29] sm:$0x1] %vm1231, 0.0
        %1245 = vst.msk [vmem:[#allocation3 + $0x39] sm:$0x1] %vm1231, 0.0
        %1246 = vst.msk [vmem:[#allocation3 + $0x49] sm:$0x1] %vm1231, 0.0
        %1247 = vst.msk [vmem:[#allocation3 + $0x59] sm:$0x1] %vm1231, 0.0
        %1248 = vst.msk [vmem:[#allocation3 + $0x69] sm:$0x1] %vm1231, 0.0
        %1249 = vst.msk [vmem:[#allocation3 + $0x79] sm:$0x1] %vm1231, 0.0
        %1250 = vst.msk [vmem:[#allocation3 + $0x89] sm:$0x1] %vm1231, 0.0
        %1251 = vst.msk [vmem:[#allocation3 + $0x99] sm:$0x1] %vm1231, 0.0
        %s1252 = scalar_lea.vmem [#allocation3], 16
        %1253 = vst.msk [vmem:[%s1252 + $0x1] sm:$0xff] %vm1224, %v1216
        %1254 = vst.msk [vmem:[%s1252 + $0x11] sm:$0xff] %vm1224, %v1217
        %1255 = vst.msk [vmem:[%s1252 + $0x21] sm:$0xff] %vm1224, %v1218
        %1256 = vst.msk [vmem:[%s1252 + $0x31] sm:$0xff] %vm1224, %v1219
        %1257 = vst.msk [vmem:[%s1252 + $0x41] sm:$0xff] %vm1224, %v1220
        %1258 = vst.msk [vmem:[%s1252 + $0x51] sm:$0xff] %vm1224, %v1221
        %1259 = vst.msk [vmem:[%s1252 + $0x61] sm:$0xff] %vm1224, %v1222
        %1260 = vst.msk [vmem:[%s1252 + $0x71] sm:$0xff] %vm1224, %v1223
        %v1261 = vld [vmem:[#allocation3] sm:$0xff]
        %v1262 = vld [vmem:[#allocation3 + $0x10] sm:$0xff]
        %v1263 = vld [vmem:[#allocation3 + $0x20] sm:$0xff]
        %v1264 = vld [vmem:[#allocation3 + $0x30] sm:$0xff]
        %v1265 = vld [vmem:[#allocation3 + $0x40] sm:$0xff]
        %v1266 = vld [vmem:[#allocation3 + $0x50] sm:$0xff]
        %v1267 = vld [vmem:[#allocation3 + $0x60] sm:$0xff]
        %v1268 = vld [vmem:[#allocation3 + $0x70] sm:$0xff]
        %v1269 = vld [vmem:[#allocation3 + $0x80] sm:$0xff]
        %v1270 = vld [vmem:[#allocation3 + $0x90] sm:$0xff]
        %v1271 = vpack.c.bf16 %v1262, %v1261
        %v1272 = vpack.c.bf16 %v1264, %v1263
        %v1273 = vpack.c.bf16 %v1266, %v1265
        %v1274 = vpack.c.bf16 %v1268, %v1267
        %v1275 = vpack.c.bf16 %v1270, %v1269
        %v1276 = vld [vmem:[%s3] sm:$0xf]
        %s1277 = scalar_lea.vmem %s3, 12
        %v1278 = vld [vmem:[%s1277] sm:$0xf]
        %v1284 = vrot.slane %v1271, 4
        %v1285 = vrot.slane %v1272, 4
        %v1286 = vsel %vm369, %v1284, %v1285
        %v1287 = vrot.slane %v1273, 4
        %v1288 = vsel %vm369, %v1285, %v1287
        %v1289 = vrot.slane %v1274, 4
        %v1290 = vsel %vm369, %v1287, %v1289
        %v1291 = vrot.slane %v1275, 4
        %v1292 = vsel %vm369, %v1289, %v1291
        %v1294 = vsel %vm1224, %v1286, 0
        %v1297 = vsel %vm1224, %v1288, 0
        %v1300 = vsel %vm1224, %v1290, 0
        %v1303 = vsel %vm1224, %v1292, 0
        %vm1305 = vcmask 1043456
        %v1307 = vsel %vm1305, %v1278, 0
        %1309 = vmatprep.subr.bf16.mxu0 0
        %1310 = vmatpush1.bf16.msra.mxu0 0
        %1311 = vmatprep.subr.bf16.mxu0 0
        %1312 = vmatpush1.bf16.msra.mxu0 0
        %1313 = vmatprep.subr.bf16.mxu0 0
        %1314 = vmatpush1.bf16.msra.mxu0 0
        %1315 = vmatprep.subr.bf16.mxu0 0
        %1316 = vmatpush1.bf16.msra.mxu0 0
        %1317 = vmatprep.subr.bf16.mxu0 0
        %1318 = vmatpush1.bf16.msra.mxu0 0
        %1319 = vmatprep.subr.bf16.mxu0 0
        %1320 = vmatpush1.bf16.msra.mxu0 0
        %1321 = vmatprep.subr.bf16.mxu0 0
        %1322 = vmatpush1.bf16.msra.mxu0 0
        %1323 = vmatprep.subr.bf16.mxu0 0
        %1324 = vmatpush1.bf16.msra.mxu0 %v1307
        %1325 = vmatprep.subr.bf16.mxu0 0
        %1326 = vmatpush2.bf16.msra.mxu0 0
        %1327 = vmatprep.subr.bf16.mxu0 0
        %1328 = vmatpush2.bf16.msra.mxu0 0
        %1329 = vmatprep.subr.bf16.mxu0 0
        %1330 = vmatpush2.bf16.msra.mxu0 0
        %1331 = vmatprep.subr.bf16.mxu0 0
        %1332 = vmatpush2.bf16.msra.mxu0 0
        %1333 = vmatprep.subr.bf16.mxu0 0
        %1334 = vmatpush2.bf16.msra.mxu0 0
        %1335 = vmatprep.subr.bf16.mxu0 0
        %1336 = vmatpush2.bf16.msra.mxu0 0
        %1337 = vmatprep.subr.bf16.mxu0 0
        %1338 = vmatpush2.bf16.msra.mxu0 0
        %1339 = vmatprep.subr.bf16.mxu0 0
        %1340 = vmatpush2.bf16.msra.mxu0 0
        %1341 = vmatprep.mubr.bf16.mxu0 0
        %1342 = vmatmul.mubr.bf16.gmra.mxu0 %v1294
        %v1343 = vpop.f32.mrf.mxu0
        %v1344 = vadd.f32 0.0, %v1343
        %v1345 = vpop.f32.mrf.mxu0
        %v1346 = vpop.f32.mrf.mxu0
        %v1347 = vadd.f32 0.0, %v1346
        %v1348 = vpop.f32.mrf.mxu0
        %1349 = vmatprep.mubr.bf16.mxu0 0
        %1350 = vmatmul.mubr.bf16.gmra.mxu0 %v1297
        %v1351 = vpop.f32.mrf.mxu0
        %v1352 = vadd.f32 0.0, %v1351
        %v1353 = vpop.f32.mrf.mxu0
        %v1354 = vpop.f32.mrf.mxu0
        %v1355 = vadd.f32 0.0, %v1354
        %v1356 = vpop.f32.mrf.mxu0
        %1357 = vmatprep.mubr.bf16.mxu0 0
        %1358 = vmatmul.mubr.bf16.gmra.mxu0 %v1300
        %v1359 = vpop.f32.mrf.mxu0
        %v1360 = vadd.f32 0.0, %v1359
        %v1361 = vpop.f32.mrf.mxu0
        %v1362 = vpop.f32.mrf.mxu0
        %v1363 = vadd.f32 0.0, %v1362
        %v1364 = vpop.f32.mrf.mxu0
        %1365 = vmatprep.mubr.bf16.mxu0 0
        %1366 = vmatmul.mubr.bf16.gmra.mxu0 %v1303
        %v1367 = vpop.f32.mrf.mxu0
        %v1368 = vadd.f32 0.0, %v1367
        %v1369 = vpop.f32.mrf.mxu0
        %v1370 = vpop.f32.mrf.mxu0
        %v1371 = vadd.f32 0.0, %v1370
        %v1372 = vpop.f32.mrf.mxu0
        %1373 = vdwg.mxu0
        %v1375 = vsel %vm1224, %v1271, 0
        %v1378 = vsel %vm1224, %v1272, 0
        %v1381 = vsel %vm1224, %v1273, 0
        %v1384 = vsel %vm1224, %v1274, 0
        %v1387 = vsel %vm1305, %v1276, 0
        %1389 = vmatprep.subr.bf16.mxu0 0
        %1390 = vmatpush1.bf16.msra.mxu0 0
        %1391 = vmatprep.subr.bf16.mxu0 0
        %1392 = vmatpush1.bf16.msra.mxu0 0
        %1393 = vmatprep.subr.bf16.mxu0 0
        %1394 = vmatpush1.bf16.msra.mxu0 0
        %1395 = vmatprep.subr.bf16.mxu0 0
        %1396 = vmatpush1.bf16.msra.mxu0 0
        %1397 = vmatprep.subr.bf16.mxu0 0
        %1398 = vmatpush1.bf16.msra.mxu0 0
        %1399 = vmatprep.subr.bf16.mxu0 0
        %1400 = vmatpush1.bf16.msra.mxu0 0
        %1401 = vmatprep.subr.bf16.mxu0 0
        %1402 = vmatpush1.bf16.msra.mxu0 0
        %1403 = vmatprep.subr.bf16.mxu0 0
        %1404 = vmatpush1.bf16.msra.mxu0 %v1387
        %1405 = vmatprep.subr.bf16.mxu0 0
        %1406 = vmatpush2.bf16.msra.mxu0 0
        %1407 = vmatprep.subr.bf16.mxu0 0
        %1408 = vmatpush2.bf16.msra.mxu0 0
        %1409 = vmatprep.subr.bf16.mxu0 0
        %1410 = vmatpush2.bf16.msra.mxu0 0
        %1411 = vmatprep.subr.bf16.mxu0 0
        %1412 = vmatpush2.bf16.msra.mxu0 0
        %1413 = vmatprep.subr.bf16.mxu0 0
        %1414 = vmatpush2.bf16.msra.mxu0 0
        %1415 = vmatprep.subr.bf16.mxu0 0
        %1416 = vmatpush2.bf16.msra.mxu0 0
        %1417 = vmatprep.subr.bf16.mxu0 0
        %1418 = vmatpush2.bf16.msra.mxu0 0
        %1419 = vmatprep.subr.bf16.mxu0 0
        %1420 = vmatpush2.bf16.msra.mxu0 0
        %1421 = vmatprep.mubr.bf16.mxu0 0
        %1422 = vmatmul.mubr.bf16.gmra.mxu0 %v1375
        %v1423 = vpop.f32.mrf.mxu0
        %v1424 = vadd.f32 %v1344, %v1423
        %v1425 = vpop.f32.mrf.mxu0
        %v1426 = vpop.f32.mrf.mxu0
        %v1427 = vadd.f32 %v1347, %v1426
        %v1428 = vpop.f32.mrf.mxu0
        %1429 = vmatprep.mubr.bf16.mxu0 0
        %1430 = vmatmul.mubr.bf16.gmra.mxu0 %v1378
        %v1431 = vpop.f32.mrf.mxu0
        %v1432 = vadd.f32 %v1352, %v1431
        %v1433 = vpop.f32.mrf.mxu0
        %v1434 = vpop.f32.mrf.mxu0
        %v1435 = vadd.f32 %v1355, %v1434
        %v1436 = vpop.f32.mrf.mxu0
        %1437 = vmatprep.mubr.bf16.mxu0 0
        %1438 = vmatmul.mubr.bf16.gmra.mxu0 %v1381
        %v1439 = vpop.f32.mrf.mxu0
        %v1440 = vadd.f32 %v1360, %v1439
        %v1441 = vpop.f32.mrf.mxu0
        %v1442 = vpop.f32.mrf.mxu0
        %v1443 = vadd.f32 %v1363, %v1442
        %v1444 = vpop.f32.mrf.mxu0
        %1445 = vmatprep.mubr.bf16.mxu0 0
        %1446 = vmatmul.mubr.bf16.gmra.mxu0 %v1384
        %v1447 = vpop.f32.mrf.mxu0
        %v1448 = vadd.f32 %v1368, %v1447
        %v1449 = vpop.f32.mrf.mxu0
        %v1450 = vpop.f32.mrf.mxu0
        %v1451 = vadd.f32 %v1371, %v1450
        %v1452 = vpop.f32.mrf.mxu0
        %1453 = vdwg.mxu0
        %s1454 = scalar_lea.vmem %s3, 24
        %v1455 = vld [vmem:[%s1454] sm:$0xf]
        %v1457 = vsel %vm1224, %v1275, 0
        %v1460 = vsel %vm1305, %v1455, 0
        %1462 = vmatprep.subr.bf16.mxu0 0
        %1463 = vmatpush1.bf16.msra.mxu0 0
        %1464 = vmatprep.subr.bf16.mxu0 0
        %1465 = vmatpush1.bf16.msra.mxu0 0
        %1466 = vmatprep.subr.bf16.mxu0 0
        %1467 = vmatpush1.bf16.msra.mxu0 0
        %1468 = vmatprep.subr.bf16.mxu0 0
        %1469 = vmatpush1.bf16.msra.mxu0 0
        %1470 = vmatprep.subr.bf16.mxu0 0
        %1471 = vmatpush1.bf16.msra.mxu0 0
        %1472 = vmatprep.subr.bf16.mxu0 0
        %1473 = vmatpush1.bf16.msra.mxu0 0
        %1474 = vmatprep.subr.bf16.mxu0 0
        %1475 = vmatpush1.bf16.msra.mxu0 0
        %1476 = vmatprep.subr.bf16.mxu0 0
        %1477 = vmatpush1.bf16.msra.mxu0 %v1460
        %1478 = vmatprep.subr.bf16.mxu0 0
        %1479 = vmatpush2.bf16.msra.mxu0 0
        %1480 = vmatprep.subr.bf16.mxu0 0
        %1481 = vmatpush2.bf16.msra.mxu0 0
        %1482 = vmatprep.subr.bf16.mxu0 0
        %1483 = vmatpush2.bf16.msra.mxu0 0
        %1484 = vmatprep.subr.bf16.mxu0 0
        %1485 = vmatpush2.bf16.msra.mxu0 0
        %1486 = vmatprep.subr.bf16.mxu0 0
        %1487 = vmatpush2.bf16.msra.mxu0 0
        %1488 = vmatprep.subr.bf16.mxu0 0
        %1489 = vmatpush2.bf16.msra.mxu0 0
        %1490 = vmatprep.subr.bf16.mxu0 0
        %1491 = vmatpush2.bf16.msra.mxu0 0
        %1492 = vmatprep.subr.bf16.mxu0 0
        %1493 = vmatpush2.bf16.msra.mxu0 0
        %1494 = vmatprep.mubr.bf16.mxu0 0
        %1495 = vmatmul.mubr.bf16.gmra.mxu0 %v1378
        %v1496 = vpop.f32.mrf.mxu0
        %v1497 = vadd.f32 0.0, %v1496
        %v1498 = vpop.f32.mrf.mxu0
        %v1499 = vpop.f32.mrf.mxu0
        %v1500 = vadd.f32 0.0, %v1499
        %v1501 = vpop.f32.mrf.mxu0
        %1502 = vmatprep.mubr.bf16.mxu0 0
        %1503 = vmatmul.mubr.bf16.gmra.mxu0 %v1381
        %v1504 = vpop.f32.mrf.mxu0
        %v1505 = vadd.f32 0.0, %v1504
        %v1506 = vpop.f32.mrf.mxu0
        %v1507 = vpop.f32.mrf.mxu0
        %v1508 = vadd.f32 0.0, %v1507
        %v1509 = vpop.f32.mrf.mxu0
        %1510 = vmatprep.mubr.bf16.mxu0 0
        %1511 = vmatmul.mubr.bf16.gmra.mxu0 %v1384
        %v1512 = vpop.f32.mrf.mxu0
        %v1513 = vadd.f32 0.0, %v1512
        %v1514 = vpop.f32.mrf.mxu0
        %v1515 = vpop.f32.mrf.mxu0
        %v1516 = vadd.f32 0.0, %v1515
        %v1517 = vpop.f32.mrf.mxu0
        %1518 = vmatprep.mubr.bf16.mxu0 0
        %1519 = vmatmul.mubr.bf16.gmra.mxu0 %v1457
        %v1520 = vpop.f32.mrf.mxu0
        %v1521 = vadd.f32 0.0, %v1520
        %v1522 = vpop.f32.mrf.mxu0
        %v1523 = vpop.f32.mrf.mxu0
        %v1524 = vadd.f32 0.0, %v1523
        %v1525 = vpop.f32.mrf.mxu0
        %1526 = vdwg.mxu0
        %v1527 = vadd.f32 %v1424, %v1497
        %v1528 = vadd.f32 %v1427, %v1500
        %v1529 = vadd.f32 %v1432, %v1505
        %v1530 = vadd.f32 %v1435, %v1508
        %v1531 = vadd.f32 %v1440, %v1513
        %v1532 = vadd.f32 %v1443, %v1516
        %v1533 = vadd.f32 %v1448, %v1521
        %v1534 = vadd.f32 %v1451, %v1524
        %v1535 = vld [vmem:[#allocation3 + $0x1] sm:$0xff]
        %v1536 = vld [vmem:[#allocation3 + $0x11] sm:$0xff]
        %v1537 = vld [vmem:[#allocation3 + $0x21] sm:$0xff]
        %v1538 = vld [vmem:[#allocation3 + $0x31] sm:$0xff]
        %v1539 = vld [vmem:[#allocation3 + $0x41] sm:$0xff]
        %v1540 = vld [vmem:[#allocation3 + $0x51] sm:$0xff]
        %v1541 = vld [vmem:[#allocation3 + $0x61] sm:$0xff]
        %v1542 = vld [vmem:[#allocation3 + $0x71] sm:$0xff]
        %v1543 = vld [vmem:[#allocation3 + $0x81] sm:$0xff]
        %v1544 = vld [vmem:[#allocation3 + $0x91] sm:$0xff]
        %v1545 = vpack.c.bf16 %v1536, %v1535
        %v1546 = vpack.c.bf16 %v1538, %v1537
        %v1547 = vpack.c.bf16 %v1540, %v1539
        %v1548 = vpack.c.bf16 %v1542, %v1541
        %v1549 = vpack.c.bf16 %v1544, %v1543
        %s1550 = scalar_lea.vmem %s3, 4
        %v1551 = vld [vmem:[%s1550] sm:$0xf]
        %v1553 = vsel %vm1224, %v1545, 0
        %v1556 = vsel %vm1224, %v1546, 0
        %v1559 = vsel %vm1224, %v1547, 0
        %v1562 = vsel %vm1224, %v1548, 0
        %v1565 = vsel %vm1305, %v1551, 0
        %1567 = vmatprep.subr.bf16.mxu0 0
        %1568 = vmatpush1.bf16.msra.mxu0 0
        %1569 = vmatprep.subr.bf16.mxu0 0
        %1570 = vmatpush1.bf16.msra.mxu0 0
        %1571 = vmatprep.subr.bf16.mxu0 0
        %1572 = vmatpush1.bf16.msra.mxu0 0
        %1573 = vmatprep.subr.bf16.mxu0 0
        %1574 = vmatpush1.bf16.msra.mxu0 0
        %1575 = vmatprep.subr.bf16.mxu0 0
        %1576 = vmatpush1.bf16.msra.mxu0 0
        %1577 = vmatprep.subr.bf16.mxu0 0
        %1578 = vmatpush1.bf16.msra.mxu0 0
        %1579 = vmatprep.subr.bf16.mxu0 0
        %1580 = vmatpush1.bf16.msra.mxu0 0
        %1581 = vmatprep.subr.bf16.mxu0 0
        %1582 = vmatpush1.bf16.msra.mxu0 %v1565
        %1583 = vmatprep.subr.bf16.mxu0 0
        %1584 = vmatpush2.bf16.msra.mxu0 0
        %1585 = vmatprep.subr.bf16.mxu0 0
        %1586 = vmatpush2.bf16.msra.mxu0 0
        %1587 = vmatprep.subr.bf16.mxu0 0
        %1588 = vmatpush2.bf16.msra.mxu0 0
        %1589 = vmatprep.subr.bf16.mxu0 0
        %1590 = vmatpush2.bf16.msra.mxu0 0
        %1591 = vmatprep.subr.bf16.mxu0 0
        %1592 = vmatpush2.bf16.msra.mxu0 0
        %1593 = vmatprep.subr.bf16.mxu0 0
        %1594 = vmatpush2.bf16.msra.mxu0 0
        %1595 = vmatprep.subr.bf16.mxu0 0
        %1596 = vmatpush2.bf16.msra.mxu0 0
        %1597 = vmatprep.subr.bf16.mxu0 0
        %1598 = vmatpush2.bf16.msra.mxu0 0
        %1599 = vmatprep.mubr.bf16.mxu0 0
        %1600 = vmatmul.mubr.bf16.gmra.mxu0 %v1553
        %v1601 = vpop.f32.mrf.mxu0
        %v1602 = vadd.f32 0.0, %v1601
        %v1603 = vpop.f32.mrf.mxu0
        %v1604 = vpop.f32.mrf.mxu0
        %v1605 = vadd.f32 0.0, %v1604
        %v1606 = vpop.f32.mrf.mxu0
        %1607 = vmatprep.mubr.bf16.mxu0 0
        %1608 = vmatmul.mubr.bf16.gmra.mxu0 %v1556
        %v1609 = vpop.f32.mrf.mxu0
        %v1610 = vadd.f32 0.0, %v1609
        %v1611 = vpop.f32.mrf.mxu0
        %v1612 = vpop.f32.mrf.mxu0
        %v1613 = vadd.f32 0.0, %v1612
        %v1614 = vpop.f32.mrf.mxu0
        %1615 = vmatprep.mubr.bf16.mxu0 0
        %1616 = vmatmul.mubr.bf16.gmra.mxu0 %v1559
        %v1617 = vpop.f32.mrf.mxu0
        %v1618 = vadd.f32 0.0, %v1617
        %v1619 = vpop.f32.mrf.mxu0
        %v1620 = vpop.f32.mrf.mxu0
        %v1621 = vadd.f32 0.0, %v1620
        %v1622 = vpop.f32.mrf.mxu0
        %1623 = vmatprep.mubr.bf16.mxu0 0
        %1624 = vmatmul.mubr.bf16.gmra.mxu0 %v1562
        %v1625 = vpop.f32.mrf.mxu0
        %v1626 = vadd.f32 0.0, %v1625
        %v1627 = vpop.f32.mrf.mxu0
        %v1628 = vpop.f32.mrf.mxu0
        %v1629 = vadd.f32 0.0, %v1628
        %v1630 = vpop.f32.mrf.mxu0
        %1631 = vdwg.mxu0
        %v1632 = vadd.f32 %v1527, %v1602
        %v1633 = vadd.f32 %v1528, %v1605
        %v1634 = vadd.f32 %v1529, %v1610
        %v1635 = vadd.f32 %v1530, %v1613
        %v1636 = vadd.f32 %v1531, %v1618
        %v1637 = vadd.f32 %v1532, %v1621
        %v1638 = vadd.f32 %v1533, %v1626
        %v1639 = vadd.f32 %v1534, %v1629
        %s1640 = scalar_lea.vmem %s3, 16
        %v1641 = vld [vmem:[%s1640] sm:$0xf]
        %v1647 = vrot.slane %v1545, 4
        %v1648 = vrot.slane %v1546, 4
        %v1649 = vsel %vm369, %v1647, %v1648
        %v1650 = vrot.slane %v1547, 4
        %v1651 = vsel %vm369, %v1648, %v1650
        %v1652 = vrot.slane %v1548, 4
        %v1653 = vsel %vm369, %v1650, %v1652
        %v1654 = vrot.slane %v1549, 4
        %v1655 = vsel %vm369, %v1652, %v1654
        %v1657 = vsel %vm1224, %v1649, 0
        %v1660 = vsel %vm1224, %v1651, 0
        %v1663 = vsel %vm1224, %v1653, 0
        %v1666 = vsel %vm1224, %v1655, 0
        %v1669 = vsel %vm1305, %v1641, 0
        %1671 = vmatprep.subr.bf16.mxu0 0
        %1672 = vmatpush1.bf16.msra.mxu0 0
        %1673 = vmatprep.subr.bf16.mxu0 0
        %1674 = vmatpush1.bf16.msra.mxu0 0
        %1675 = vmatprep.subr.bf16.mxu0 0
        %1676 = vmatpush1.bf16.msra.mxu0 0
        %1677 = vmatprep.subr.bf16.mxu0 0
        %1678 = vmatpush1.bf16.msra.mxu0 0
        %1679 = vmatprep.subr.bf16.mxu0 0
        %1680 = vmatpush1.bf16.msra.mxu0 0
        %1681 = vmatprep.subr.bf16.mxu0 0
        %1682 = vmatpush1.bf16.msra.mxu0 0
        %1683 = vmatprep.subr.bf16.mxu0 0
        %1684 = vmatpush1.bf16.msra.mxu0 0
        %1685 = vmatprep.subr.bf16.mxu0 0
        %1686 = vmatpush1.bf16.msra.mxu0 %v1669
        %1687 = vmatprep.subr.bf16.mxu0 0
        %1688 = vmatpush2.bf16.msra.mxu0 0
        %1689 = vmatprep.subr.bf16.mxu0 0
        %1690 = vmatpush2.bf16.msra.mxu0 0
        %1691 = vmatprep.subr.bf16.mxu0 0
        %1692 = vmatpush2.bf16.msra.mxu0 0
        %1693 = vmatprep.subr.bf16.mxu0 0
        %1694 = vmatpush2.bf16.msra.mxu0 0
        %1695 = vmatprep.subr.bf16.mxu0 0
        %1696 = vmatpush2.bf16.msra.mxu0 0
        %1697 = vmatprep.subr.bf16.mxu0 0
        %1698 = vmatpush2.bf16.msra.mxu0 0
        %1699 = vmatprep.subr.bf16.mxu0 0
        %1700 = vmatpush2.bf16.msra.mxu0 0
        %1701 = vmatprep.subr.bf16.mxu0 0
        %1702 = vmatpush2.bf16.msra.mxu0 0
        %1703 = vmatprep.mubr.bf16.mxu0 0
        %1704 = vmatmul.mubr.bf16.gmra.mxu0 %v1657
        %v1705 = vpop.f32.mrf.mxu0
        %v1706 = vadd.f32 0.0, %v1705
        %v1707 = vpop.f32.mrf.mxu0
        %v1708 = vpop.f32.mrf.mxu0
        %v1709 = vadd.f32 0.0, %v1708
        %v1710 = vpop.f32.mrf.mxu0
        %1711 = vmatprep.mubr.bf16.mxu0 0
        %1712 = vmatmul.mubr.bf16.gmra.mxu0 %v1660
        %v1713 = vpop.f32.mrf.mxu0
        %v1714 = vadd.f32 0.0, %v1713
        %v1715 = vpop.f32.mrf.mxu0
        %v1716 = vpop.f32.mrf.mxu0
        %v1717 = vadd.f32 0.0, %v1716
        %v1718 = vpop.f32.mrf.mxu0
        %1719 = vmatprep.mubr.bf16.mxu0 0
        %1720 = vmatmul.mubr.bf16.gmra.mxu0 %v1663
        %v1721 = vpop.f32.mrf.mxu0
        %v1722 = vadd.f32 0.0, %v1721
        %v1723 = vpop.f32.mrf.mxu0
        %v1724 = vpop.f32.mrf.mxu0
        %v1725 = vadd.f32 0.0, %v1724
        %v1726 = vpop.f32.mrf.mxu0
        %1727 = vmatprep.mubr.bf16.mxu0 0
        %1728 = vmatmul.mubr.bf16.gmra.mxu0 %v1666
        %v1729 = vpop.f32.mrf.mxu0
        %v1730 = vadd.f32 0.0, %v1729
        %v1731 = vpop.f32.mrf.mxu0
        %v1732 = vpop.f32.mrf.mxu0
        %v1733 = vadd.f32 0.0, %v1732
        %v1734 = vpop.f32.mrf.mxu0
        %1735 = vdwg.mxu0
        %v1736 = vadd.f32 %v1632, %v1706
        %v1737 = vadd.f32 %v1633, %v1709
        %v1738 = vadd.f32 %v1634, %v1714
        %v1739 = vadd.f32 %v1635, %v1717
        %v1740 = vadd.f32 %v1636, %v1722
        %v1741 = vadd.f32 %v1637, %v1725
        %v1742 = vadd.f32 %v1638, %v1730
        %v1743 = vadd.f32 %v1639, %v1733
        %s1744 = scalar_lea.vmem %s3, 28
        %v1745 = vld [vmem:[%s1744] sm:$0xf]
        %v1747 = vsel %vm1224, %v1549, 0
        %v1750 = vsel %vm1305, %v1745, 0
        %1752 = vmatprep.subr.bf16.mxu0 0
        %1753 = vmatpush1.bf16.msra.mxu0 0
        %1754 = vmatprep.subr.bf16.mxu0 0
        %1755 = vmatpush1.bf16.msra.mxu0 0
        %1756 = vmatprep.subr.bf16.mxu0 0
        %1757 = vmatpush1.bf16.msra.mxu0 0
        %1758 = vmatprep.subr.bf16.mxu0 0
        %1759 = vmatpush1.bf16.msra.mxu0 0
        %1760 = vmatprep.subr.bf16.mxu0 0
        %1761 = vmatpush1.bf16.msra.mxu0 0
        %1762 = vmatprep.subr.bf16.mxu0 0
        %1763 = vmatpush1.bf16.msra.mxu0 0
        %1764 = vmatprep.subr.bf16.mxu0 0
        %1765 = vmatpush1.bf16.msra.mxu0 0
        %1766 = vmatprep.subr.bf16.mxu0 0
        %1767 = vmatpush1.bf16.msra.mxu0 %v1750
        %1768 = vmatprep.subr.bf16.mxu0 0
        %1769 = vmatpush2.bf16.msra.mxu0 0
        %1770 = vmatprep.subr.bf16.mxu0 0
        %1771 = vmatpush2.bf16.msra.mxu0 0
        %1772 = vmatprep.subr.bf16.mxu0 0
        %1773 = vmatpush2.bf16.msra.mxu0 0
        %1774 = vmatprep.subr.bf16.mxu0 0
        %1775 = vmatpush2.bf16.msra.mxu0 0
        %1776 = vmatprep.subr.bf16.mxu0 0
        %1777 = vmatpush2.bf16.msra.mxu0 0
        %1778 = vmatprep.subr.bf16.mxu0 0
        %1779 = vmatpush2.bf16.msra.mxu0 0
        %1780 = vmatprep.subr.bf16.mxu0 0
        %1781 = vmatpush2.bf16.msra.mxu0 0
        %1782 = vmatprep.subr.bf16.mxu0 0
        %1783 = vmatpush2.bf16.msra.mxu0 0
        %1784 = vmatprep.mubr.bf16.mxu0 0
        %1785 = vmatmul.mubr.bf16.gmra.mxu0 %v1556
        %v1786 = vpop.f32.mrf.mxu0
        %v1787 = vadd.f32 0.0, %v1786
        %v1788 = vpop.f32.mrf.mxu0
        %v1789 = vpop.f32.mrf.mxu0
        %v1790 = vadd.f32 0.0, %v1789
        %v1791 = vpop.f32.mrf.mxu0
        %1792 = vmatprep.mubr.bf16.mxu0 0
        %1793 = vmatmul.mubr.bf16.gmra.mxu0 %v1559
        %v1794 = vpop.f32.mrf.mxu0
        %v1795 = vadd.f32 0.0, %v1794
        %v1796 = vpop.f32.mrf.mxu0
        %v1797 = vpop.f32.mrf.mxu0
        %v1798 = vadd.f32 0.0, %v1797
        %v1799 = vpop.f32.mrf.mxu0
        %1800 = vmatprep.mubr.bf16.mxu0 0
        %1801 = vmatmul.mubr.bf16.gmra.mxu0 %v1562
        %v1802 = vpop.f32.mrf.mxu0
        %v1803 = vadd.f32 0.0, %v1802
        %v1804 = vpop.f32.mrf.mxu0
        %v1805 = vpop.f32.mrf.mxu0
        %v1806 = vadd.f32 0.0, %v1805
        %v1807 = vpop.f32.mrf.mxu0
        %1808 = vmatprep.mubr.bf16.mxu0 0
        %1809 = vmatmul.mubr.bf16.gmra.mxu0 %v1747
        %v1810 = vpop.f32.mrf.mxu0
        %v1811 = vadd.f32 0.0, %v1810
        %v1812 = vpop.f32.mrf.mxu0
        %v1813 = vpop.f32.mrf.mxu0
        %v1814 = vadd.f32 0.0, %v1813
        %v1815 = vpop.f32.mrf.mxu0
        %1816 = vdwg.mxu0
        %v1817 = vadd.f32 %v1736, %v1787
        %v1818 = vadd.f32 %v1737, %v1790
        %v1819 = vadd.f32 %v1738, %v1795
        %v1820 = vadd.f32 %v1739, %v1798
        %v1821 = vadd.f32 %v1740, %v1803
        %v1822 = vadd.f32 %v1741, %v1806
        %v1823 = vadd.f32 %v1742, %v1811
        %v1824 = vadd.f32 %v1743, %v1814
        %v1825 = vld [vmem:[#allocation3 + $0x2] sm:$0xff]
        %v1826 = vld [vmem:[#allocation3 + $0x12] sm:$0xff]
        %v1827 = vld [vmem:[#allocation3 + $0x22] sm:$0xff]
        %v1828 = vld [vmem:[#allocation3 + $0x32] sm:$0xff]
        %v1829 = vld [vmem:[#allocation3 + $0x42] sm:$0xff]
        %v1830 = vld [vmem:[#allocation3 + $0x52] sm:$0xff]
        %v1831 = vld [vmem:[#allocation3 + $0x62] sm:$0xff]
        %v1832 = vld [vmem:[#allocation3 + $0x72] sm:$0xff]
        %v1833 = vld [vmem:[#allocation3 + $0x82] sm:$0xff]
        %v1834 = vld [vmem:[#allocation3 + $0x92] sm:$0xff]
        %v1835 = vpack.c.bf16 %v1826, %v1825
        %v1836 = vpack.c.bf16 %v1828, %v1827
        %v1837 = vpack.c.bf16 %v1830, %v1829
        %v1838 = vpack.c.bf16 %v1832, %v1831
        %v1839 = vpack.c.bf16 %v1834, %v1833
        %s1840 = scalar_lea.vmem %s3, 8
        %v1841 = vld [vmem:[%s1840] sm:$0xf]
        %v1843 = vsel %vm1224, %v1835, 0
        %v1846 = vsel %vm1224, %v1836, 0
        %v1849 = vsel %vm1224, %v1837, 0
        %v1852 = vsel %vm1224, %v1838, 0
        %v1855 = vsel %vm1305, %v1841, 0
        %1857 = vmatprep.subr.bf16.mxu0 0
        %1858 = vmatpush1.bf16.msra.mxu0 0
        %1859 = vmatprep.subr.bf16.mxu0 0
        %1860 = vmatpush1.bf16.msra.mxu0 0
        %1861 = vmatprep.subr.bf16.mxu0 0
        %1862 = vmatpush1.bf16.msra.mxu0 0
        %1863 = vmatprep.subr.bf16.mxu0 0
        %1864 = vmatpush1.bf16.msra.mxu0 0
        %1865 = vmatprep.subr.bf16.mxu0 0
        %1866 = vmatpush1.bf16.msra.mxu0 0
        %1867 = vmatprep.subr.bf16.mxu0 0
        %1868 = vmatpush1.bf16.msra.mxu0 0
        %1869 = vmatprep.subr.bf16.mxu0 0
        %1870 = vmatpush1.bf16.msra.mxu0 0
        %1871 = vmatprep.subr.bf16.mxu0 0
        %1872 = vmatpush1.bf16.msra.mxu0 %v1855
        %1873 = vmatprep.subr.bf16.mxu0 0
        %1874 = vmatpush2.bf16.msra.mxu0 0
        %1875 = vmatprep.subr.bf16.mxu0 0
        %1876 = vmatpush2.bf16.msra.mxu0 0
        %1877 = vmatprep.subr.bf16.mxu0 0
        %1878 = vmatpush2.bf16.msra.mxu0 0
        %1879 = vmatprep.subr.bf16.mxu0 0
        %1880 = vmatpush2.bf16.msra.mxu0 0
        %1881 = vmatprep.subr.bf16.mxu0 0
        %1882 = vmatpush2.bf16.msra.mxu0 0
        %1883 = vmatprep.subr.bf16.mxu0 0
        %1884 = vmatpush2.bf16.msra.mxu0 0
        %1885 = vmatprep.subr.bf16.mxu0 0
        %1886 = vmatpush2.bf16.msra.mxu0 0
        %1887 = vmatprep.subr.bf16.mxu0 0
        %1888 = vmatpush2.bf16.msra.mxu0 0
        %1889 = vmatprep.mubr.bf16.mxu0 0
        %1890 = vmatmul.mubr.bf16.gmra.mxu0 %v1843
        %v1891 = vpop.f32.mrf.mxu0
        %v1892 = vadd.f32 0.0, %v1891
        %v1893 = vpop.f32.mrf.mxu0
        %v1894 = vpop.f32.mrf.mxu0
        %v1895 = vadd.f32 0.0, %v1894
        %v1896 = vpop.f32.mrf.mxu0
        %1897 = vmatprep.mubr.bf16.mxu0 0
        %1898 = vmatmul.mubr.bf16.gmra.mxu0 %v1846
        %v1899 = vpop.f32.mrf.mxu0
        %v1900 = vadd.f32 0.0, %v1899
        %v1901 = vpop.f32.mrf.mxu0
        %v1902 = vpop.f32.mrf.mxu0
        %v1903 = vadd.f32 0.0, %v1902
        %v1904 = vpop.f32.mrf.mxu0
        %1905 = vmatprep.mubr.bf16.mxu0 0
        %1906 = vmatmul.mubr.bf16.gmra.mxu0 %v1849
        %v1907 = vpop.f32.mrf.mxu0
        %v1908 = vadd.f32 0.0, %v1907
        %v1909 = vpop.f32.mrf.mxu0
        %v1910 = vpop.f32.mrf.mxu0
        %v1911 = vadd.f32 0.0, %v1910
        %v1912 = vpop.f32.mrf.mxu0
        %1913 = vmatprep.mubr.bf16.mxu0 0
        %1914 = vmatmul.mubr.bf16.gmra.mxu0 %v1852
        %v1915 = vpop.f32.mrf.mxu0
        %v1916 = vadd.f32 0.0, %v1915
        %v1917 = vpop.f32.mrf.mxu0
        %v1918 = vpop.f32.mrf.mxu0
        %v1919 = vadd.f32 0.0, %v1918
        %v1920 = vpop.f32.mrf.mxu0
        %1921 = vdwg.mxu0
        %v1922 = vadd.f32 %v1817, %v1892
        %v1923 = vadd.f32 %v1818, %v1895
        %v1924 = vadd.f32 %v1819, %v1900
        %v1925 = vadd.f32 %v1820, %v1903
        %v1926 = vadd.f32 %v1821, %v1908
        %v1927 = vadd.f32 %v1822, %v1911
        %v1928 = vadd.f32 %v1823, %v1916
        %v1929 = vadd.f32 %v1824, %v1919
        %s1930 = scalar_lea.vmem %s3, 20
        %v1931 = vld [vmem:[%s1930] sm:$0xf]
        %v1937 = vrot.slane %v1835, 4
        %v1938 = vrot.slane %v1836, 4
        %v1939 = vsel %vm369, %v1937, %v1938
        %v1940 = vrot.slane %v1837, 4
        %v1941 = vsel %vm369, %v1938, %v1940
        %v1942 = vrot.slane %v1838, 4
        %v1943 = vsel %vm369, %v1940, %v1942
        %v1944 = vrot.slane %v1839, 4
        %v1945 = vsel %vm369, %v1942, %v1944
        %v1947 = vsel %vm1224, %v1939, 0
        %v1950 = vsel %vm1224, %v1941, 0
        %v1953 = vsel %vm1224, %v1943, 0
        %v1956 = vsel %vm1224, %v1945, 0
        %v1959 = vsel %vm1305, %v1931, 0
        %1961 = vmatprep.subr.bf16.mxu0 0
        %1962 = vmatpush1.bf16.msra.mxu0 0
        %1963 = vmatprep.subr.bf16.mxu0 0
        %1964 = vmatpush1.bf16.msra.mxu0 0
        %1965 = vmatprep.subr.bf16.mxu0 0
        %1966 = vmatpush1.bf16.msra.mxu0 0
        %1967 = vmatprep.subr.bf16.mxu0 0
        %1968 = vmatpush1.bf16.msra.mxu0 0
        %1969 = vmatprep.subr.bf16.mxu0 0
        %1970 = vmatpush1.bf16.msra.mxu0 0
        %1971 = vmatprep.subr.bf16.mxu0 0
        %1972 = vmatpush1.bf16.msra.mxu0 0
        %1973 = vmatprep.subr.bf16.mxu0 0
        %1974 = vmatpush1.bf16.msra.mxu0 0
        %1975 = vmatprep.subr.bf16.mxu0 0
        %1976 = vmatpush1.bf16.msra.mxu0 %v1959
        %1977 = vmatprep.subr.bf16.mxu0 0
        %1978 = vmatpush2.bf16.msra.mxu0 0
        %1979 = vmatprep.subr.bf16.mxu0 0
        %1980 = vmatpush2.bf16.msra.mxu0 0
        %1981 = vmatprep.subr.bf16.mxu0 0
        %1982 = vmatpush2.bf16.msra.mxu0 0
        %1983 = vmatprep.subr.bf16.mxu0 0
        %1984 = vmatpush2.bf16.msra.mxu0 0
        %1985 = vmatprep.subr.bf16.mxu0 0
        %1986 = vmatpush2.bf16.msra.mxu0 0
        %1987 = vmatprep.subr.bf16.mxu0 0
        %1988 = vmatpush2.bf16.msra.mxu0 0
        %1989 = vmatprep.subr.bf16.mxu0 0
        %1990 = vmatpush2.bf16.msra.mxu0 0
        %1991 = vmatprep.subr.bf16.mxu0 0
        %1992 = vmatpush2.bf16.msra.mxu0 0
        %1993 = vmatprep.mubr.bf16.mxu0 0
        %1994 = vmatmul.mubr.bf16.gmra.mxu0 %v1947
        %v1995 = vpop.f32.mrf.mxu0
        %v1996 = vadd.f32 0.0, %v1995
        %v1997 = vpop.f32.mrf.mxu0
        %v1998 = vpop.f32.mrf.mxu0
        %v1999 = vadd.f32 0.0, %v1998
        %v2000 = vpop.f32.mrf.mxu0
        %2001 = vmatprep.mubr.bf16.mxu0 0
        %2002 = vmatmul.mubr.bf16.gmra.mxu0 %v1950
        %v2003 = vpop.f32.mrf.mxu0
        %v2004 = vadd.f32 0.0, %v2003
        %v2005 = vpop.f32.mrf.mxu0
        %v2006 = vpop.f32.mrf.mxu0
        %v2007 = vadd.f32 0.0, %v2006
        %v2008 = vpop.f32.mrf.mxu0
        %2009 = vmatprep.mubr.bf16.mxu0 0
        %2010 = vmatmul.mubr.bf16.gmra.mxu0 %v1953
        %v2011 = vpop.f32.mrf.mxu0
        %v2012 = vadd.f32 0.0, %v2011
        %v2013 = vpop.f32.mrf.mxu0
        %v2014 = vpop.f32.mrf.mxu0
        %v2015 = vadd.f32 0.0, %v2014
        %v2016 = vpop.f32.mrf.mxu0
        %2017 = vmatprep.mubr.bf16.mxu0 0
        %2018 = vmatmul.mubr.bf16.gmra.mxu0 %v1956
        %v2019 = vpop.f32.mrf.mxu0
        %v2020 = vadd.f32 0.0, %v2019
        %v2021 = vpop.f32.mrf.mxu0
        %v2022 = vpop.f32.mrf.mxu0
        %v2023 = vadd.f32 0.0, %v2022
        %v2024 = vpop.f32.mrf.mxu0
        %2025 = vdwg.mxu0
        %v2026 = vadd.f32 %v1922, %v1996
        %v2027 = vadd.f32 %v1923, %v1999
        %v2028 = vadd.f32 %v1924, %v2004
        %v2029 = vadd.f32 %v1925, %v2007
        %v2030 = vadd.f32 %v1926, %v2012
        %v2031 = vadd.f32 %v1927, %v2015
        %v2032 = vadd.f32 %v1928, %v2020
        %v2033 = vadd.f32 %v1929, %v2023
        %s2034 = scalar_lea.vmem %s3, 32
        %v2035 = vld [vmem:[%s2034] sm:$0xf]
        %v2037 = vsel %vm1224, %v1839, 0
        %v2040 = vsel %vm1305, %v2035, 0
        %2042 = vmatprep.subr.bf16.mxu0 0
        %2043 = vmatpush1.bf16.msra.mxu0 0
        %2044 = vmatprep.subr.bf16.mxu0 0
        %2045 = vmatpush1.bf16.msra.mxu0 0
        %2046 = vmatprep.subr.bf16.mxu0 0
        %2047 = vmatpush1.bf16.msra.mxu0 0
        %2048 = vmatprep.subr.bf16.mxu0 0
        %2049 = vmatpush1.bf16.msra.mxu0 0
        %2050 = vmatprep.subr.bf16.mxu0 0
        %2051 = vmatpush1.bf16.msra.mxu0 0
        %2052 = vmatprep.subr.bf16.mxu0 0
        %2053 = vmatpush1.bf16.msra.mxu0 0
        %2054 = vmatprep.subr.bf16.mxu0 0
        %2055 = vmatpush1.bf16.msra.mxu0 0
        %2056 = vmatprep.subr.bf16.mxu0 0
        %2057 = vmatpush1.bf16.msra.mxu0 %v2040
        %2058 = vmatprep.subr.bf16.mxu0 0
        %2059 = vmatpush2.bf16.msra.mxu0 0
        %2060 = vmatprep.subr.bf16.mxu0 0
        %2061 = vmatpush2.bf16.msra.mxu0 0
        %2062 = vmatprep.subr.bf16.mxu0 0
        %2063 = vmatpush2.bf16.msra.mxu0 0
        %2064 = vmatprep.subr.bf16.mxu0 0
        %2065 = vmatpush2.bf16.msra.mxu0 0
        %2066 = vmatprep.subr.bf16.mxu0 0
        %2067 = vmatpush2.bf16.msra.mxu0 0
        %2068 = vmatprep.subr.bf16.mxu0 0
        %2069 = vmatpush2.bf16.msra.mxu0 0
        %2070 = vmatprep.subr.bf16.mxu0 0
        %2071 = vmatpush2.bf16.msra.mxu0 0
        %2072 = vmatprep.subr.bf16.mxu0 0
        %2073 = vmatpush2.bf16.msra.mxu0 0
        %2074 = vmatprep.mubr.bf16.mxu0 0
        %2075 = vmatmul.mubr.bf16.gmra.mxu0 %v1846
        %v2076 = vpop.f32.mrf.mxu0
        %v2077 = vadd.f32 0.0, %v2076
        %v2078 = vpop.f32.mrf.mxu0
        %v2079 = vpop.f32.mrf.mxu0
        %v2080 = vadd.f32 0.0, %v2079
        %v2081 = vpop.f32.mrf.mxu0
        %2082 = vmatprep.mubr.bf16.mxu0 0
        %2083 = vmatmul.mubr.bf16.gmra.mxu0 %v1849
        %v2084 = vpop.f32.mrf.mxu0
        %v2085 = vadd.f32 0.0, %v2084
        %v2086 = vpop.f32.mrf.mxu0
        %v2087 = vpop.f32.mrf.mxu0
        %v2088 = vadd.f32 0.0, %v2087
        %v2089 = vpop.f32.mrf.mxu0
        %2090 = vmatprep.mubr.bf16.mxu0 0
        %2091 = vmatmul.mubr.bf16.gmra.mxu0 %v1852
        %v2092 = vpop.f32.mrf.mxu0
        %v2093 = vadd.f32 0.0, %v2092
        %v2094 = vpop.f32.mrf.mxu0
        %v2095 = vpop.f32.mrf.mxu0
        %v2096 = vadd.f32 0.0, %v2095
        %v2097 = vpop.f32.mrf.mxu0
        %2098 = vmatprep.mubr.bf16.mxu0 0
        %2099 = vmatmul.mubr.bf16.gmra.mxu0 %v2037
        %v2100 = vpop.f32.mrf.mxu0
        %v2101 = vadd.f32 0.0, %v2100
        %v2102 = vpop.f32.mrf.mxu0
        %v2103 = vpop.f32.mrf.mxu0
        %v2104 = vadd.f32 0.0, %v2103
        %v2105 = vpop.f32.mrf.mxu0
        %2106 = vdwg.mxu0
        %v2107 = vadd.f32 %v2026, %v2077
        %v2108 = vadd.f32 %v2027, %v2080
        %v2109 = vadd.f32 %v2028, %v2085
        %v2110 = vadd.f32 %v2029, %v2088
        %v2111 = vadd.f32 %v2030, %v2093
        %v2112 = vadd.f32 %v2031, %v2096
        %v2113 = vadd.f32 %v2032, %v2101
        %v2114 = vadd.f32 %v2033, %v2104
        %v2115 = vld [vmem:[%s4] sm:$0x1]
        %v2117 = vlaneseq
        %v2118 = vshrl.u32 %v2117, 7
        %v2119 = vsub.s32 0, %v2118
        %v2120 = vrot.slane %v2115, %v2119
        %v2122 = vadd.f32 %v2107, %v2120
        %v2123 = vadd.f32 %v2108, %v2120
        %v2124 = vadd.f32 %v2109, %v2120
        %v2125 = vadd.f32 %v2110, %v2120
        %v2126 = vadd.f32 %v2111, %v2120
        %v2127 = vadd.f32 %v2112, %v2120
        %v2128 = vadd.f32 %v2113, %v2120
        %v2129 = vadd.f32 %v2114, %v2120
        %v2130 = vmax.f32 %v2122, 0.0
        %v2131 = vmax.f32 %v2123, 0.0
        %v2132 = vmax.f32 %v2124, 0.0
        %v2133 = vmax.f32 %v2125, 0.0
        %v2134 = vmax.f32 %v2126, 0.0
        %v2135 = vmax.f32 %v2127, 0.0
        %v2136 = vmax.f32 %v2128, 0.0
        %v2137 = vmax.f32 %v2129, 0.0
        %2138 = vst.msk [vmem:[%s242] sm:$0xff] %vm1224, %v2130
        %2139 = vst.msk [vmem:[%s242 + $0x8] sm:$0xff] %vm1224, %v2131
        %2140 = vst.msk [vmem:[%s242 + $0x10] sm:$0xff] %vm1224, %v2132
        %2141 = vst.msk [vmem:[%s242 + $0x18] sm:$0xff] %vm1224, %v2133
        %2142 = vst.msk [vmem:[%s242 + $0x20] sm:$0xff] %vm1224, %v2134
        %2143 = vst.msk [vmem:[%s242 + $0x28] sm:$0xff] %vm1224, %v2135
        %2144 = vst.msk [vmem:[%s242 + $0x30] sm:$0xff] %vm1224, %v2136
        %2145 = vst.msk [vmem:[%s242 + $0x38] sm:$0xff] %vm1224, %v2137
        %s2146 = sand.u32 %s140, 1
        %s2147 = scalar_lea.sflag [#allocation6], %s2146
        %s2148 = sand.u32 %s140, 1
        %s2149 = smul.addr %s2148, 64
        %s2150 = scalar_lea.vmem [#allocation7], %s2149
        // Predicated region
        $region45: #{tpu_custom_call.1} parent=39 // pred_check
          %p2151 = pneg %p150
        $region46: #{tpu_custom_call.1} parent=39 // pred_check_branch
          %2153 = sbr.rel (%p2151) target = $region48
        $region47: #{tpu_custom_call.1} parent=39 // pred_region
          %s2155 = ssub.s32 1024, 1024
          %2156 = vsyncadd %s2147, %s2155
          %s2157 = smul.addr %s22, 8
          %s2158 = smul.addr %s2157, 128
          %s2159 = scalar_lea.hbm %s5, %s2158
          %s2160 = sshll.u32 %s2150, 4
          %s2161 = int_to_ptr.vmem [resolvable:$true] %s2160
          %2166 = dma.vmem_to_hbm [thread:$0]  %s2161, 1024, %s2159, %s2147, 128, 128, 8
        $region48: #{tpu_custom_call.1} parent=39 // pred_fallthru
          _
      $region40: #{tpu_custom_call.1} parent=5 // pred_fallthru
        _
      %p2167 = scmp.le.s32.totalorder 2, %s17
      // Predicated region
      $region49: #{tpu_custom_call.1} parent=5 // pred_check
        %p2168 = pneg %p2167
      $region50: #{tpu_custom_call.1} parent=5 // pred_check_branch
        %2170 = sbr.rel (%p2168) target = $region52
      $region51: #{tpu_custom_call.1} parent=5 // pred_region
        %s2171 = ssub.s32 %s17, 2
        // Predicated region
        $region53: #{tpu_custom_call.1} parent=51 // pred_check
          %p2172 = pneg %p156
        $region54: #{tpu_custom_call.1} parent=51 // pred_check_branch
          %2174 = sbr.rel (%p2172) target = $region56
        $region55: #{tpu_custom_call.1} parent=51 // pred_region
          %s2175 = sand.u32 %s141, 1
          %s2176 = scalar_lea.sflag [#allocation6], %s2175
          %s2177 = sand.u32 %s141, 1
          %s2178 = smul.addr %s2177, 64
          %s2179 = scalar_lea.vmem [#allocation7], %s2178
          %2180 = dma.done %s2176, 1024
        $region56: #{tpu_custom_call.1} parent=51 // pred_fallthru
          _
      $region52: #{tpu_custom_call.1} parent=5 // pred_fallthru
        _
    $region6: #{tpu_custom_call.1} parent=1 // loop_footer
      %s21 = sadd.s32 1, %s17
    $region7: #{tpu_custom_call.1} parent=1 // loop_footer_branch
      %16 = sbr.rel target = $region3
    $region8: #{tpu_custom_call.1} parent=1 // loop_exit
      _
    %2181 = vsyncpa [#allocation5], 1
    %s2182 = scalar_lea.sflag [#allocation5], 1
    %2183 = vsyncpa %s2182, 1
    %2184 = vsyncpa [#allocation6], 1
    %s2185 = scalar_lea.sflag [#allocation6], 1
    %2186 = vsyncpa %s2185, 1

</llo_original>
